<compile_context>
chip_gen: v6e
topology: v6e:2x2x1
jax: 0.10.0
libtpu: 0.0.40
codegen_flags: <defaults>
</compile_context>

<pallas_src>
import functools
import math

import jax
import jax.numpy as jnp
from jax.experimental import pallas as pl
from jax.experimental.pallas import tpu as pltpu


def _round_up(x, m):
    return ((x + m - 1) // m) * m


def _vmem():
    return pl.BlockSpec(memory_space=pltpu.MemorySpace.VMEM)


# ----------------------------- Pallas kernel --------------------------------

def _tagger_kernel(sent_ref, emb_ref, w_ih_ref, w_hh_ref, b_ref,
                   w_tag_ref, b_tag_ref, o_ref, *,
                   seq_len, hidden_pad, tagset_size):
    f32 = jnp.float32
    hp = hidden_pad
    vp = emb_ref.shape[0]

    # ---- embedding lookup as a one-hot matmul (MXU-friendly gather) ----
    ids = sent_ref[...]                                           # (L, 1) int32
    lane = jax.lax.broadcasted_iota(jnp.int32, (seq_len, vp), 1)
    one_hot = (lane == ids).astype(f32)                           # (L, VP)
    embeds = jnp.dot(one_hot, emb_ref[...],
                     preferred_element_type=f32)                  # (L, EP)

    # ---- input projection for all timesteps at once: (L, 4*HP) ----
    xproj = jnp.dot(embeds, w_ih_ref[...],
                    preferred_element_type=f32) + b_ref[...]

    # ---- LSTM recurrence (PyTorch gate order i, f, g, o), fully unrolled ----
    w_hh = w_hh_ref[...]
    h = jnp.zeros((1, hp), f32)
    c = jnp.zeros((1, hp), f32)
    hs = []
    for t in range(seq_len):
        gates = xproj[t:t + 1, :] + jnp.dot(h, w_hh,
                                            preferred_element_type=f32)
        i = jax.nn.sigmoid(gates[:, 0 * hp:1 * hp])
        f = jax.nn.sigmoid(gates[:, 1 * hp:2 * hp])
        g = jnp.tanh(gates[:, 2 * hp:3 * hp])
        o = jax.nn.sigmoid(gates[:, 3 * hp:4 * hp])
        c = f * c + i * g
        h = o * jnp.tanh(c)
        hs.append(h)
    lstm_out = jnp.concatenate(hs, axis=0)                        # (L, HP)

    # ---- hidden2tag + log_softmax restricted to the real tag lanes ----
    tag_space = jnp.dot(lstm_out, w_tag_ref[...],
                        preferred_element_type=f32) + b_tag_ref[...]   # (L, TP)
    tp = tag_space.shape[-1]
    valid = jax.lax.broadcasted_iota(jnp.int32, (seq_len, tp), 1) < tagset_size
    masked = jnp.where(valid, tag_space, f32(-1e30))
    m = jnp.max(masked, axis=-1, keepdims=True)
    e = jnp.where(valid, jnp.exp(tag_space - m), f32(0.0))
    lse = jnp.log(jnp.sum(e, axis=-1, keepdims=True))
    o_ref[...] = tag_space - (m + lse)


# ----------------------------- parameters -----------------------------------

def init_params(key, vocab_size, embedding_dim, hidden_dim, tagset_size):
    """Raw parameters in PyTorch layout (weight_ih: (4H,E), gate order i,f,g,o)."""
    ks = jax.random.split(key, 7)
    k = 1.0 / math.sqrt(hidden_dim)

    def u(kk, shape):
        return jax.random.uniform(kk, shape, jnp.float32, -k, k)

    return {
        "emb": jax.random.normal(ks[0], (vocab_size, embedding_dim), jnp.float32),
        "w_ih": u(ks[1], (4 * hidden_dim, embedding_dim)),
        "w_hh": u(ks[2], (4 * hidden_dim, hidden_dim)),
        "b_ih": u(ks[3], (4 * hidden_dim,)),
        "b_hh": u(ks[4], (4 * hidden_dim,)),
        "w_tag": u(ks[5], (tagset_size, hidden_dim)),
        "b_tag": u(ks[6], (tagset_size,)),
    }


def pack_params(raw):
    """Transpose + zero-pad every feature dim to a multiple of 128 (done once)."""
    vocab, emb_dim = raw["emb"].shape
    hidden = raw["w_hh"].shape[1]
    tagset = raw["w_tag"].shape[0]
    vp = _round_up(vocab, 128)
    ep = _round_up(emb_dim, 128)
    hp = _round_up(hidden, 128)
    tp = _round_up(tagset, 128)

    emb_p = jnp.zeros((vp, ep), jnp.float32).at[:vocab, :emb_dim].set(raw["emb"])

    w_ih_t = raw["w_ih"].T                       # (E, 4H)
    w_hh_t = raw["w_hh"].T                       # (H, 4H)
    bias = raw["b_ih"] + raw["b_hh"]             # (4H,)
    w_ih_p = jnp.zeros((ep, 4 * hp), jnp.float32)
    w_hh_p = jnp.zeros((hp, 4 * hp), jnp.float32)
    b_p = jnp.zeros((1, 4 * hp), jnp.float32)
    for g in range(4):                           # keep PyTorch gate order i,f,g,o
        w_ih_p = w_ih_p.at[:emb_dim, g * hp:g * hp + hidden].set(
            w_ih_t[:, g * hidden:(g + 1) * hidden])
        w_hh_p = w_hh_p.at[:hidden, g * hp:g * hp + hidden].set(
            w_hh_t[:, g * hidden:(g + 1) * hidden])
        b_p = b_p.at[0, g * hp:g * hp + hidden].set(
            bias[g * hidden:(g + 1) * hidden])

    w_tag_p = jnp.zeros((hp, tp), jnp.float32).at[:hidden, :tagset].set(
        raw["w_tag"].T)
    b_tag_p = jnp.zeros((1, tp), jnp.float32).at[0, :tagset].set(raw["b_tag"])

    return {"emb": emb_p, "w_ih": w_ih_p, "w_hh": w_hh_p, "b": b_p,
            "w_tag": w_tag_p, "b_tag": b_tag_p}


# ----------------------------- forward pass ----------------------------------

def tagger_forward(packed, sentence, *, tagset_size):
    """sentence: (L,) int32 token ids  ->  (L, tagset_size) log-probabilities."""
    seq_len = sentence.shape[0]
    hidden_pad = packed["w_hh"].shape[0]
    tag_pad = packed["w_tag"].shape[1]
    sent = sentence.astype(jnp.int32).reshape(seq_len, 1)

    out = pl.pallas_call(
        functools.partial(_tagger_kernel, seq_len=seq_len,
                          hidden_pad=hidden_pad, tagset_size=tagset_size),
        out_shape=jax.ShapeDtypeStruct((seq_len, tag_pad), jnp.float32),
        in_specs=[_vmem()] * 7,
        out_specs=_vmem(),
    )(sent, packed["emb"], packed["w_ih"], packed["w_hh"], packed["b"],
      packed["w_tag"], packed["b_tag"])
    return out[:, :tagset_size]


# ----------------------------- pure-JAX reference ----------------------------

def reference_forward(raw, sentence):
    embeds = raw["emb"][sentence]                                  # (L, E)
    hidden = raw["w_hh"].shape[1]

    def step(carry, x):
        h, c = carry
        gates = (x @ raw["w_ih"].T + raw["b_ih"]
                 + h @ raw["w_hh"].T + raw["b_hh"])
        i, f, g, o = jnp.split(gates, 4)
        i = jax.nn.sigmoid(i)
        f = jax.nn.sigmoid(f)
        g = jnp.tanh(g)
        o = jax.nn.sigmoid(o)
        c = f * c + i * g
        h = o * jnp.tanh(c)
        return (h, c), h

    init = (jnp.zeros((hidden,), jnp.float32), jnp.zeros((hidden,), jnp.float32))
    _, hs = jax.lax.scan(step, init, embeds)
    tag_space = hs @ raw["w_tag"].T + raw["b_tag"]
    return jax.nn.log_softmax(tag_space, axis=-1)


if __name__ == "__main__":
    SEQ_LEN = 8
    EMBEDDING_DIM = 32
    HIDDEN_DIM = 32
    VOCAB_SIZE = 32
    TAGSET_SIZE = 8

    key = jax.random.PRNGKey(0)
    kp, ks = jax.random.split(key)
    raw = init_params(kp, VOCAB_SIZE, EMBEDDING_DIM, HIDDEN_DIM, TAGSET_SIZE)
    packed = pack_params(raw)
    sentence = jax.random.randint(ks, (SEQ_LEN,), 0, VOCAB_SIZE, dtype=jnp.int32)

    fwd = jax.jit(functools.partial(tagger_forward, tagset_size=TAGSET_SIZE))
    out = jax.block_until_ready(fwd(packed, sentence))

    assert out.shape == (SEQ_LEN, TAGSET_SIZE) and out.dtype == jnp.float32
    assert bool(jnp.all(jnp.isfinite(out)))

    # Correctness vs. a pure-JAX reference of the PyTorch module.
    ref = reference_forward(raw, sentence)
    assert bool(jnp.allclose(out, ref, rtol=1e-3, atol=1e-3)), \
        float(jnp.max(jnp.abs(out - ref)))
    # log_softmax rows exponentiate and sum to 1.
    assert bool(jnp.allclose(jnp.sum(jnp.exp(out), axis=-1), 1.0, atol=1e-3))

    print("KERNEL_OK")
</pallas_src>

<mosaic_0001>
module attributes {stable_mosaic.version = 11 : i64} {
  func.func @_tagger_kernel(%arg0: memref<8x1xi32, #tpu.memory_space<vmem>>, %arg1: memref<128x128xf32, #tpu.memory_space<vmem>>, %arg2: memref<128x512xf32, #tpu.memory_space<vmem>>, %arg3: memref<128x512xf32, #tpu.memory_space<vmem>>, %arg4: memref<1x512xf32, #tpu.memory_space<vmem>>, %arg5: memref<128x128xf32, #tpu.memory_space<vmem>>, %arg6: memref<1x128xf32, #tpu.memory_space<vmem>>, %arg7: memref<8x128xf32, #tpu.memory_space<vmem>>) attributes {dimension_semantics = [], scalar_prefetch = 0 : i64, scratch_operands = 0 : i64, tpu.core_type = #tpu.core_type<tc>} {
    %c0 = arith.constant 0 : index
    %c0_0 = arith.constant 0 : index
    %0 = vector.load %arg0[%c0, %c0_0] : memref<8x1xi32, #tpu.memory_space<vmem>>, vector<8x1xi32>
    %1 = tpu.iota {dimensions = array<i32: 1>} : vector<8x128xi32>
    %2 = vector.broadcast %0 : vector<8x1xi32> to vector<8x128xi32>
    %3 = arith.cmpi eq, %1, %2 : vector<8x128xi32>
    %4 = arith.extui %3 : vector<8x128xi1> to vector<8x128xi32>
    %5 = arith.sitofp %4 : vector<8x128xi32> to vector<8x128xf32>
    %c0_1 = arith.constant 0 : index
    %c0_2 = arith.constant 0 : index
    %6 = vector.load %arg1[%c0_1, %c0_2] : memref<128x128xf32, #tpu.memory_space<vmem>>, vector<128x128xf32>
    %cst = arith.constant dense<0.000000e+00> : vector<8x128xf32>
    %7 = tpu.matmul %5, %6, %cst {dimension_numbers = #tpu.dot_dimension_numbers<[1], [0], [0], [1], [0, 0, 1, 1], [], []>} : vector<8x128xf32>, vector<128x128xf32>, vector<8x128xf32> -> vector<8x128xf32>
    %c0_3 = arith.constant 0 : index
    %c0_4 = arith.constant 0 : index
    %8 = vector.load %arg2[%c0_3, %c0_4] : memref<128x512xf32, #tpu.memory_space<vmem>>, vector<128x512xf32>
    %cst_5 = arith.constant dense<0.000000e+00> : vector<8x512xf32>
    %9 = tpu.matmul %7, %8, %cst_5 {dimension_numbers = #tpu.dot_dimension_numbers<[1], [0], [0], [1], [0, 0, 1, 1], [], []>} : vector<8x128xf32>, vector<128x512xf32>, vector<8x512xf32> -> vector<8x512xf32>
    %c0_6 = arith.constant 0 : index
    %c0_7 = arith.constant 0 : index
    %10 = vector.load %arg4[%c0_6, %c0_7] : memref<1x512xf32, #tpu.memory_space<vmem>>, vector<1x512xf32>
    %11 = vector.broadcast %10 : vector<1x512xf32> to vector<8x512xf32>
    %12 = arith.addf %9, %11 : vector<8x512xf32>
    %c0_8 = arith.constant 0 : index
    %c0_9 = arith.constant 0 : index
    %13 = vector.load %arg3[%c0_8, %c0_9] : memref<128x512xf32, #tpu.memory_space<vmem>>, vector<128x512xf32>
    %cst_10 = arith.constant 0.000000e+00 : f32
    %14 = vector.broadcast %cst_10 : f32 to vector<1x128xf32>
    %cst_11 = arith.constant 0.000000e+00 : f32
    %15 = vector.broadcast %cst_11 : f32 to vector<1x128xf32>
    %16 = vector.extract_strided_slice %12 {offsets = [0, 0], sizes = [1, 512], strides = [1, 1]} : vector<8x512xf32> to vector<1x512xf32>
    %cst_12 = arith.constant dense<0.000000e+00> : vector<1x512xf32>
    %17 = tpu.matmul %14, %13, %cst_12 {dimension_numbers = #tpu.dot_dimension_numbers<[1], [0], [0], [1], [0, 0, 1, 1], [], []>} : vector<1x128xf32>, vector<128x512xf32>, vector<1x512xf32> -> vector<1x512xf32>
    %18 = arith.addf %16, %17 : vector<1x512xf32>
    %19 = vector.extract_strided_slice %18 {offsets = [0, 0], sizes = [1, 128], strides = [1, 1]} : vector<1x512xf32> to vector<1x128xf32>
    %20 = arith.negf %19 : vector<1x128xf32>
    %21 = math.exp %20 : vector<1x128xf32>
    %cst_13 = arith.constant 1.000000e+00 : f32
    %22 = vector.broadcast %cst_13 : f32 to vector<1x128xf32>
    %23 = arith.addf %22, %21 : vector<1x128xf32>
    %24 = arith.divf %22, %23 : vector<1x128xf32>
    %25 = vector.extract_strided_slice %18 {offsets = [0, 128], sizes = [1, 128], strides = [1, 1]} : vector<1x512xf32> to vector<1x128xf32>
    %26 = arith.negf %25 : vector<1x128xf32>
    %27 = math.exp %26 : vector<1x128xf32>
    %cst_14 = arith.constant 1.000000e+00 : f32
    %28 = vector.broadcast %cst_14 : f32 to vector<1x128xf32>
    %29 = arith.addf %28, %27 : vector<1x128xf32>
    %30 = arith.divf %28, %29 : vector<1x128xf32>
    %31 = vector.extract_strided_slice %18 {offsets = [0, 256], sizes = [1, 128], strides = [1, 1]} : vector<1x512xf32> to vector<1x128xf32>
    %32 = math.tanh %31 : vector<1x128xf32>
    %33 = vector.extract_strided_slice %18 {offsets = [0, 384], sizes = [1, 128], strides = [1, 1]} : vector<1x512xf32> to vector<1x128xf32>
    %34 = arith.negf %33 : vector<1x128xf32>
    %35 = math.exp %34 : vector<1x128xf32>
    %cst_15 = arith.constant 1.000000e+00 : f32
    %36 = vector.broadcast %cst_15 : f32 to vector<1x128xf32>
    %37 = arith.addf %36, %35 : vector<1x128xf32>
    %38 = arith.divf %36, %37 : vector<1x128xf32>
    %39 = arith.mulf %30, %15 : vector<1x128xf32>
    %40 = arith.mulf %24, %32 : vector<1x128xf32>
    %41 = arith.addf %39, %40 : vector<1x128xf32>
    %42 = math.tanh %41 : vector<1x128xf32>
    %43 = arith.mulf %38, %42 : vector<1x128xf32>
    %44 = vector.extract_strided_slice %12 {offsets = [1, 0], sizes = [1, 512], strides = [1, 1]} : vector<8x512xf32> to vector<1x512xf32>
    %cst_16 = arith.constant dense<0.000000e+00> : vector<1x512xf32>
    %45 = tpu.matmul %43, %13, %cst_16 {dimension_numbers = #tpu.dot_dimension_numbers<[1], [0], [0], [1], [0, 0, 1, 1], [], []>} : vector<1x128xf32>, vector<128x512xf32>, vector<1x512xf32> -> vector<1x512xf32>
    %46 = arith.addf %44, %45 : vector<1x512xf32>
    %47 = vector.extract_strided_slice %46 {offsets = [0, 0], sizes = [1, 128], strides = [1, 1]} : vector<1x512xf32> to vector<1x128xf32>
    %48 = arith.negf %47 : vector<1x128xf32>
    %49 = math.exp %48 : vector<1x128xf32>
    %cst_17 = arith.constant 1.000000e+00 : f32
    %50 = vector.broadcast %cst_17 : f32 to vector<1x128xf32>
    %51 = arith.addf %50, %49 : vector<1x128xf32>
    %52 = arith.divf %50, %51 : vector<1x128xf32>
    %53 = vector.extract_strided_slice %46 {offsets = [0, 128], sizes = [1, 128], strides = [1, 1]} : vector<1x512xf32> to vector<1x128xf32>
    %54 = arith.negf %53 : vector<1x128xf32>
    %55 = math.exp %54 : vector<1x128xf32>
    %cst_18 = arith.constant 1.000000e+00 : f32
    %56 = vector.broadcast %cst_18 : f32 to vector<1x128xf32>
    %57 = arith.addf %56, %55 : vector<1x128xf32>
    %58 = arith.divf %56, %57 : vector<1x128xf32>
    %59 = vector.extract_strided_slice %46 {offsets = [0, 256], sizes = [1, 128], strides = [1, 1]} : vector<1x512xf32> to vector<1x128xf32>
    %60 = math.tanh %59 : vector<1x128xf32>
    %61 = vector.extract_strided_slice %46 {offsets = [0, 384], sizes = [1, 128], strides = [1, 1]} : vector<1x512xf32> to vector<1x128xf32>
    %62 = arith.negf %61 : vector<1x128xf32>
    %63 = math.exp %62 : vector<1x128xf32>
    %cst_19 = arith.constant 1.000000e+00 : f32
    %64 = vector.broadcast %cst_19 : f32 to vector<1x128xf32>
    %65 = arith.addf %64, %63 : vector<1x128xf32>
    %66 = arith.divf %64, %65 : vector<1x128xf32>
    %67 = arith.mulf %58, %41 : vector<1x128xf32>
    %68 = arith.mulf %52, %60 : vector<1x128xf32>
    %69 = arith.addf %67, %68 : vector<1x128xf32>
    %70 = math.tanh %69 : vector<1x128xf32>
    %71 = arith.mulf %66, %70 : vector<1x128xf32>
    %72 = vector.extract_strided_slice %12 {offsets = [2, 0], sizes = [1, 512], strides = [1, 1]} : vector<8x512xf32> to vector<1x512xf32>
    %cst_20 = arith.constant dense<0.000000e+00> : vector<1x512xf32>
    %73 = tpu.matmul %71, %13, %cst_20 {dimension_numbers = #tpu.dot_dimension_numbers<[1], [0], [0], [1], [0, 0, 1, 1], [], []>} : vector<1x128xf32>, vector<128x512xf32>, vector<1x512xf32> -> vector<1x512xf32>
    %74 = arith.addf %72, %73 : vector<1x512xf32>
    %75 = vector.extract_strided_slice %74 {offsets = [0, 0], sizes = [1, 128], strides = [1, 1]} : vector<1x512xf32> to vector<1x128xf32>
    %76 = arith.negf %75 : vector<1x128xf32>
    %77 = math.exp %76 : vector<1x128xf32>
    %cst_21 = arith.constant 1.000000e+00 : f32
    %78 = vector.broadcast %cst_21 : f32 to vector<1x128xf32>
    %79 = arith.addf %78, %77 : vector<1x128xf32>
    %80 = arith.divf %78, %79 : vector<1x128xf32>
    %81 = vector.extract_strided_slice %74 {offsets = [0, 128], sizes = [1, 128], strides = [1, 1]} : vector<1x512xf32> to vector<1x128xf32>
    %82 = arith.negf %81 : vector<1x128xf32>
    %83 = math.exp %82 : vector<1x128xf32>
    %cst_22 = arith.constant 1.000000e+00 : f32
    %84 = vector.broadcast %cst_22 : f32 to vector<1x128xf32>
    %85 = arith.addf %84, %83 : vector<1x128xf32>
    %86 = arith.divf %84, %85 : vector<1x128xf32>
    %87 = vector.extract_strided_slice %74 {offsets = [0, 256], sizes = [1, 128], strides = [1, 1]} : vector<1x512xf32> to vector<1x128xf32>
    %88 = math.tanh %87 : vector<1x128xf32>
    %89 = vector.extract_strided_slice %74 {offsets = [0, 384], sizes = [1, 128], strides = [1, 1]} : vector<1x512xf32> to vector<1x128xf32>
    %90 = arith.negf %89 : vector<1x128xf32>
    %91 = math.exp %90 : vector<1x128xf32>
    %cst_23 = arith.constant 1.000000e+00 : f32
    %92 = vector.broadcast %cst_23 : f32 to vector<1x128xf32>
    %93 = arith.addf %92, %91 : vector<1x128xf32>
    %94 = arith.divf %92, %93 : vector<1x128xf32>
    %95 = arith.mulf %86, %69 : vector<1x128xf32>
    %96 = arith.mulf %80, %88 : vector<1x128xf32>
    %97 = arith.addf %95, %96 : vector<1x128xf32>
    %98 = math.tanh %97 : vector<1x128xf32>
    %99 = arith.mulf %94, %98 : vector<1x128xf32>
    %100 = vector.extract_strided_slice %12 {offsets = [3, 0], sizes = [1, 512], strides = [1, 1]} : vector<8x512xf32> to vector<1x512xf32>
    %cst_24 = arith.constant dense<0.000000e+00> : vector<1x512xf32>
    %101 = tpu.matmul %99, %13, %cst_24 {dimension_numbers = #tpu.dot_dimension_numbers<[1], [0], [0], [1], [0, 0, 1, 1], [], []>} : vector<1x128xf32>, vector<128x512xf32>, vector<1x512xf32> -> vector<1x512xf32>
    %102 = arith.addf %100, %101 : vector<1x512xf32>
    %103 = vector.extract_strided_slice %102 {offsets = [0, 0], sizes = [1, 128], strides = [1, 1]} : vector<1x512xf32> to vector<1x128xf32>
    %104 = arith.negf %103 : vector<1x128xf32>
    %105 = math.exp %104 : vector<1x128xf32>
    %cst_25 = arith.constant 1.000000e+00 : f32
    %106 = vector.broadcast %cst_25 : f32 to vector<1x128xf32>
    %107 = arith.addf %106, %105 : vector<1x128xf32>
    %108 = arith.divf %106, %107 : vector<1x128xf32>
    %109 = vector.extract_strided_slice %102 {offsets = [0, 128], sizes = [1, 128], strides = [1, 1]} : vector<1x512xf32> to vector<1x128xf32>
    %110 = arith.negf %109 : vector<1x128xf32>
    %111 = math.exp %110 : vector<1x128xf32>
    %cst_26 = arith.constant 1.000000e+00 : f32
    %112 = vector.broadcast %cst_26 : f32 to vector<1x128xf32>
    %113 = arith.addf %112, %111 : vector<1x128xf32>
    %114 = arith.divf %112, %113 : vector<1x128xf32>
    %115 = vector.extract_strided_slice %102 {offsets = [0, 256], sizes = [1, 128], strides = [1, 1]} : vector<1x512xf32> to vector<1x128xf32>
    %116 = math.tanh %115 : vector<1x128xf32>
    %117 = vector.extract_strided_slice %102 {offsets = [0, 384], sizes = [1, 128], strides = [1, 1]} : vector<1x512xf32> to vector<1x128xf32>
    %118 = arith.negf %117 : vector<1x128xf32>
    %119 = math.exp %118 : vector<1x128xf32>
    %cst_27 = arith.constant 1.000000e+00 : f32
    %120 = vector.broadcast %cst_27 : f32 to vector<1x128xf32>
    %121 = arith.addf %120, %119 : vector<1x128xf32>
    %122 = arith.divf %120, %121 : vector<1x128xf32>
    %123 = arith.mulf %114, %97 : vector<1x128xf32>
    %124 = arith.mulf %108, %116 : vector<1x128xf32>
    %125 = arith.addf %123, %124 : vector<1x128xf32>
    %126 = math.tanh %125 : vector<1x128xf32>
    %127 = arith.mulf %122, %126 : vector<1x128xf32>
    %128 = vector.extract_strided_slice %12 {offsets = [4, 0], sizes = [1, 512], strides = [1, 1]} : vector<8x512xf32> to vector<1x512xf32>
    %cst_28 = arith.constant dense<0.000000e+00> : vector<1x512xf32>
    %129 = tpu.matmul %127, %13, %cst_28 {dimension_numbers = #tpu.dot_dimension_numbers<[1], [0], [0], [1], [0, 0, 1, 1], [], []>} : vector<1x128xf32>, vector<128x512xf32>, vector<1x512xf32> -> vector<1x512xf32>
    %130 = arith.addf %128, %129 : vector<1x512xf32>
    %131 = vector.extract_strided_slice %130 {offsets = [0, 0], sizes = [1, 128], strides = [1, 1]} : vector<1x512xf32> to vector<1x128xf32>
    %132 = arith.negf %131 : vector<1x128xf32>
    %133 = math.exp %132 : vector<1x128xf32>
    %cst_29 = arith.constant 1.000000e+00 : f32
    %134 = vector.broadcast %cst_29 : f32 to vector<1x128xf32>
    %135 = arith.addf %134, %133 : vector<1x128xf32>
    %136 = arith.divf %134, %135 : vector<1x128xf32>
    %137 = vector.extract_strided_slice %130 {offsets = [0, 128], sizes = [1, 128], strides = [1, 1]} : vector<1x512xf32> to vector<1x128xf32>
    %138 = arith.negf %137 : vector<1x128xf32>
    %139 = math.exp %138 : vector<1x128xf32>
    %cst_30 = arith.constant 1.000000e+00 : f32
    %140 = vector.broadcast %cst_30 : f32 to vector<1x128xf32>
    %141 = arith.addf %140, %139 : vector<1x128xf32>
    %142 = arith.divf %140, %141 : vector<1x128xf32>
    %143 = vector.extract_strided_slice %130 {offsets = [0, 256], sizes = [1, 128], strides = [1, 1]} : vector<1x512xf32> to vector<1x128xf32>
    %144 = math.tanh %143 : vector<1x128xf32>
    %145 = vector.extract_strided_slice %130 {offsets = [0, 384], sizes = [1, 128], strides = [1, 1]} : vector<1x512xf32> to vector<1x128xf32>
    %146 = arith.negf %145 : vector<1x128xf32>
    %147 = math.exp %146 : vector<1x128xf32>
    %cst_31 = arith.constant 1.000000e+00 : f32
    %148 = vector.broadcast %cst_31 : f32 to vector<1x128xf32>
    %149 = arith.addf %148, %147 : vector<1x128xf32>
    %150 = arith.divf %148, %149 : vector<1x128xf32>
    %151 = arith.mulf %142, %125 : vector<1x128xf32>
    %152 = arith.mulf %136, %144 : vector<1x128xf32>
    %153 = arith.addf %151, %152 : vector<1x128xf32>
    %154 = math.tanh %153 : vector<1x128xf32>
    %155 = arith.mulf %150, %154 : vector<1x128xf32>
    %156 = vector.extract_strided_slice %12 {offsets = [5, 0], sizes = [1, 512], strides = [1, 1]} : vector<8x512xf32> to vector<1x512xf32>
    %cst_32 = arith.constant dense<0.000000e+00> : vector<1x512xf32>
    %157 = tpu.matmul %155, %13, %cst_32 {dimension_numbers = #tpu.dot_dimension_numbers<[1], [0], [0], [1], [0, 0, 1, 1], [], []>} : vector<1x128xf32>, vector<128x512xf32>, vector<1x512xf32> -> vector<1x512xf32>
    %158 = arith.addf %156, %157 : vector<1x512xf32>
    %159 = vector.extract_strided_slice %158 {offsets = [0, 0], sizes = [1, 128], strides = [1, 1]} : vector<1x512xf32> to vector<1x128xf32>
    %160 = arith.negf %159 : vector<1x128xf32>
    %161 = math.exp %160 : vector<1x128xf32>
    %cst_33 = arith.constant 1.000000e+00 : f32
    %162 = vector.broadcast %cst_33 : f32 to vector<1x128xf32>
    %163 = arith.addf %162, %161 : vector<1x128xf32>
    %164 = arith.divf %162, %163 : vector<1x128xf32>
    %165 = vector.extract_strided_slice %158 {offsets = [0, 128], sizes = [1, 128], strides = [1, 1]} : vector<1x512xf32> to vector<1x128xf32>
    %166 = arith.negf %165 : vector<1x128xf32>
    %167 = math.exp %166 : vector<1x128xf32>
    %cst_34 = arith.constant 1.000000e+00 : f32
    %168 = vector.broadcast %cst_34 : f32 to vector<1x128xf32>
    %169 = arith.addf %168, %167 : vector<1x128xf32>
    %170 = arith.divf %168, %169 : vector<1x128xf32>
    %171 = vector.extract_strided_slice %158 {offsets = [0, 256], sizes = [1, 128], strides = [1, 1]} : vector<1x512xf32> to vector<1x128xf32>
    %172 = math.tanh %171 : vector<1x128xf32>
    %173 = vector.extract_strided_slice %158 {offsets = [0, 384], sizes = [1, 128], strides = [1, 1]} : vector<1x512xf32> to vector<1x128xf32>
    %174 = arith.negf %173 : vector<1x128xf32>
    %175 = math.exp %174 : vector<1x128xf32>
    %cst_35 = arith.constant 1.000000e+00 : f32
    %176 = vector.broadcast %cst_35 : f32 to vector<1x128xf32>
    %177 = arith.addf %176, %175 : vector<1x128xf32>
    %178 = arith.divf %176, %177 : vector<1x128xf32>
    %179 = arith.mulf %170, %153 : vector<1x128xf32>
    %180 = arith.mulf %164, %172 : vector<1x128xf32>
    %181 = arith.addf %179, %180 : vector<1x128xf32>
    %182 = math.tanh %181 : vector<1x128xf32>
    %183 = arith.mulf %178, %182 : vector<1x128xf32>
    %184 = vector.extract_strided_slice %12 {offsets = [6, 0], sizes = [1, 512], strides = [1, 1]} : vector<8x512xf32> to vector<1x512xf32>
    %cst_36 = arith.constant dense<0.000000e+00> : vector<1x512xf32>
    %185 = tpu.matmul %183, %13, %cst_36 {dimension_numbers = #tpu.dot_dimension_numbers<[1], [0], [0], [1], [0, 0, 1, 1], [], []>} : vector<1x128xf32>, vector<128x512xf32>, vector<1x512xf32> -> vector<1x512xf32>
    %186 = arith.addf %184, %185 : vector<1x512xf32>
    %187 = vector.extract_strided_slice %186 {offsets = [0, 0], sizes = [1, 128], strides = [1, 1]} : vector<1x512xf32> to vector<1x128xf32>
    %188 = arith.negf %187 : vector<1x128xf32>
    %189 = math.exp %188 : vector<1x128xf32>
    %cst_37 = arith.constant 1.000000e+00 : f32
    %190 = vector.broadcast %cst_37 : f32 to vector<1x128xf32>
    %191 = arith.addf %190, %189 : vector<1x128xf32>
    %192 = arith.divf %190, %191 : vector<1x128xf32>
    %193 = vector.extract_strided_slice %186 {offsets = [0, 128], sizes = [1, 128], strides = [1, 1]} : vector<1x512xf32> to vector<1x128xf32>
    %194 = arith.negf %193 : vector<1x128xf32>
    %195 = math.exp %194 : vector<1x128xf32>
    %cst_38 = arith.constant 1.000000e+00 : f32
    %196 = vector.broadcast %cst_38 : f32 to vector<1x128xf32>
    %197 = arith.addf %196, %195 : vector<1x128xf32>
    %198 = arith.divf %196, %197 : vector<1x128xf32>
    %199 = vector.extract_strided_slice %186 {offsets = [0, 256], sizes = [1, 128], strides = [1, 1]} : vector<1x512xf32> to vector<1x128xf32>
    %200 = math.tanh %199 : vector<1x128xf32>
    %201 = vector.extract_strided_slice %186 {offsets = [0, 384], sizes = [1, 128], strides = [1, 1]} : vector<1x512xf32> to vector<1x128xf32>
    %202 = arith.negf %201 : vector<1x128xf32>
    %203 = math.exp %202 : vector<1x128xf32>
    %cst_39 = arith.constant 1.000000e+00 : f32
    %204 = vector.broadcast %cst_39 : f32 to vector<1x128xf32>
    %205 = arith.addf %204, %203 : vector<1x128xf32>
    %206 = arith.divf %204, %205 : vector<1x128xf32>
    %207 = arith.mulf %198, %181 : vector<1x128xf32>
    %208 = arith.mulf %192, %200 : vector<1x128xf32>
    %209 = arith.addf %207, %208 : vector<1x128xf32>
    %210 = math.tanh %209 : vector<1x128xf32>
    %211 = arith.mulf %206, %210 : vector<1x128xf32>
    %212 = vector.extract_strided_slice %12 {offsets = [7, 0], sizes = [1, 512], strides = [1, 1]} : vector<8x512xf32> to vector<1x512xf32>
    %cst_40 = arith.constant dense<0.000000e+00> : vector<1x512xf32>
    %213 = tpu.matmul %211, %13, %cst_40 {dimension_numbers = #tpu.dot_dimension_numbers<[1], [0], [0], [1], [0, 0, 1, 1], [], []>} : vector<1x128xf32>, vector<128x512xf32>, vector<1x512xf32> -> vector<1x512xf32>
    %214 = arith.addf %212, %213 : vector<1x512xf32>
    %215 = vector.extract_strided_slice %214 {offsets = [0, 0], sizes = [1, 128], strides = [1, 1]} : vector<1x512xf32> to vector<1x128xf32>
    %216 = arith.negf %215 : vector<1x128xf32>
    %217 = math.exp %216 : vector<1x128xf32>
    %cst_41 = arith.constant 1.000000e+00 : f32
    %218 = vector.broadcast %cst_41 : f32 to vector<1x128xf32>
    %219 = arith.addf %218, %217 : vector<1x128xf32>
    %220 = arith.divf %218, %219 : vector<1x128xf32>
    %221 = vector.extract_strided_slice %214 {offsets = [0, 128], sizes = [1, 128], strides = [1, 1]} : vector<1x512xf32> to vector<1x128xf32>
    %222 = arith.negf %221 : vector<1x128xf32>
    %223 = math.exp %222 : vector<1x128xf32>
    %cst_42 = arith.constant 1.000000e+00 : f32
    %224 = vector.broadcast %cst_42 : f32 to vector<1x128xf32>
    %225 = arith.addf %224, %223 : vector<1x128xf32>
    %226 = arith.divf %224, %225 : vector<1x128xf32>
    %227 = vector.extract_strided_slice %214 {offsets = [0, 256], sizes = [1, 128], strides = [1, 1]} : vector<1x512xf32> to vector<1x128xf32>
    %228 = math.tanh %227 : vector<1x128xf32>
    %229 = vector.extract_strided_slice %214 {offsets = [0, 384], sizes = [1, 128], strides = [1, 1]} : vector<1x512xf32> to vector<1x128xf32>
    %230 = arith.negf %229 : vector<1x128xf32>
    %231 = math.exp %230 : vector<1x128xf32>
    %cst_43 = arith.constant 1.000000e+00 : f32
    %232 = vector.broadcast %cst_43 : f32 to vector<1x128xf32>
    %233 = arith.addf %232, %231 : vector<1x128xf32>
    %234 = arith.divf %232, %233 : vector<1x128xf32>
    %235 = arith.mulf %226, %209 : vector<1x128xf32>
    %236 = arith.mulf %220, %228 : vector<1x128xf32>
    %237 = arith.addf %235, %236 : vector<1x128xf32>
    %238 = math.tanh %237 : vector<1x128xf32>
    %239 = arith.mulf %234, %238 : vector<1x128xf32>
    %240 = tpu.concatenate %43, %71, %99, %127, %155, %183, %211, %239 in 0 : vector<1x128xf32>, vector<1x128xf32>, vector<1x128xf32>, vector<1x128xf32>, vector<1x128xf32>, vector<1x128xf32>, vector<1x128xf32>, vector<1x128xf32> -> vector<8x128xf32>
    %c0_44 = arith.constant 0 : index
    %c0_45 = arith.constant 0 : index
    %241 = vector.load %arg5[%c0_44, %c0_45] : memref<128x128xf32, #tpu.memory_space<vmem>>, vector<128x128xf32>
    %cst_46 = arith.constant dense<0.000000e+00> : vector<8x128xf32>
    %242 = tpu.matmul %240, %241, %cst_46 {dimension_numbers = #tpu.dot_dimension_numbers<[1], [0], [0], [1], [0, 0, 1, 1], [], []>} : vector<8x128xf32>, vector<128x128xf32>, vector<8x128xf32> -> vector<8x128xf32>
    %c0_47 = arith.constant 0 : index
    %c0_48 = arith.constant 0 : index
    %243 = vector.load %arg6[%c0_47, %c0_48] : memref<1x128xf32, #tpu.memory_space<vmem>>, vector<1x128xf32>
    %244 = vector.broadcast %243 : vector<1x128xf32> to vector<8x128xf32>
    %245 = arith.addf %242, %244 : vector<8x128xf32>
    %246 = tpu.iota {dimensions = array<i32: 1>} : vector<8x128xi32>
    %c8_i32 = arith.constant 8 : i32
    %247 = vector.broadcast %c8_i32 : i32 to vector<8x128xi32>
    %248 = arith.cmpi slt, %246, %247 : vector<8x128xi32>
    %cst_49 = arith.constant -1.000000e+30 : f32
    %249 = vector.broadcast %cst_49 : f32 to vector<8x128xf32>
    %250 = arith.select %248, %245, %249 : vector<8x128xi1>, vector<8x128xf32>
    %cst_50 = arith.constant dense<0xFF800000> : vector<8xf32>
    %251 = vector.multi_reduction <maximumf>, %250, %cst_50 [1] : vector<8x128xf32> to vector<8xf32>
    %252 = vector.shape_cast %251 : vector<8xf32> to vector<8x1xf32>
    %253 = vector.broadcast %252 : vector<8x1xf32> to vector<8x128xf32>
    %254 = arith.subf %245, %253 : vector<8x128xf32>
    %255 = math.exp %254 : vector<8x128xf32>
    %cst_51 = arith.constant 0.000000e+00 : f32
    %256 = vector.broadcast %cst_51 : f32 to vector<8x128xf32>
    %257 = arith.select %248, %255, %256 : vector<8x128xi1>, vector<8x128xf32>
    %cst_52 = arith.constant dense<0.000000e+00> : vector<8xf32>
    %258 = vector.multi_reduction <add>, %257, %cst_52 [1] : vector<8x128xf32> to vector<8xf32>
    %259 = vector.shape_cast %258 : vector<8xf32> to vector<8x1xf32>
    %260 = math.log %259 : vector<8x1xf32>
    %261 = arith.addf %252, %260 : vector<8x1xf32>
    %262 = vector.broadcast %261 : vector<8x1xf32> to vector<8x128xf32>
    %263 = arith.subf %245, %262 : vector<8x128xf32>
    %c0_53 = arith.constant 0 : index
    %c0_54 = arith.constant 0 : index
    %264 = vector.load %arg7[%c0_53, %c0_54] : memref<8x128xf32, #tpu.memory_space<vmem>>, vector<8x128xf32>
    tpu.vector_store %arg7[%c0_53, %c0_54], %263 {strides = array<i32>} : memref<8x128xf32, #tpu.memory_space<vmem>>, vector<8x128xf32>,
    return
  }
}

</mosaic_0001>

<llo_original>
// kernel: tagger_forward.1
$region0: #{tagger_forward.1}
  #allocation0 [shape = 'u32[]', space=smem, size = 0x4, offset = 0x4, fixed_abs, tag = 'smem constant byte address 0x4 - core index']
  #allocation1 [shape = 'u32[144,128]{1,0:T(1,128)}', space=vmem, size = 0x12000, scoped, tag = 'internal scratch']
  %s0 = inlined_call_operand.vmem [shape: s32[8,1], index: 0, kind: input, shape index: {}]
  %s1 = inlined_call_operand.hbm [shape: f32[128,128], index: 1, kind: input, shape index: {}]
  %s2 = inlined_call_operand.hbm [shape: f32[128,512], index: 2, kind: input, shape index: {}]
  %s3 = inlined_call_operand.hbm [shape: f32[128,512], index: 3, kind: input, shape index: {}]
  %s4 = inlined_call_operand.vmem [shape: f32[1,512], index: 4, kind: input, shape index: {}]
  %s5 = inlined_call_operand.hbm [shape: f32[128,128], index: 5, kind: input, shape index: {}]
  %s6 = inlined_call_operand.vmem [shape: f32[1,128], index: 6, kind: input, shape index: {}]
  %s7 = inlined_call_operand.hbm [shape: f32[8,128], index: 7, kind: output, shape index: {}]
  %s8 = sld [smem:[#allocation0]]
  $region54: #{tagger_forward.1} parent=0
    _
  %s10 = ssub.s32 1, %s8
  %s11 = scalar_select 0, %s10, %s8
  $region1: #{tagger_forward.1} parent=0
    #allocation2 [shape = 'u8[65536]{0}', space=vmem, size = 0x10000, scoped, tag = 'input window, operand 1, single buffered']
    #allocation3 [shape = 's32[1]{0}', space=sflag, size = 0x4, scoped, tag = 'scoped memory for tagger_forward.1']
    #allocation4 [shape = 's32[1]{0}', space=sflag, size = 0x4, scoped, tag = 'scoped memory for tagger_forward.1']
    #allocation5 [shape = 'u8[262144]{0}', space=vmem, size = 0x40000, scoped, tag = 'input window, operand 2, single buffered']
    #allocation6 [shape = 's32[1]{0}', space=sflag, size = 0x4, scoped, tag = 'scoped memory for tagger_forward.1']
    #allocation7 [shape = 'u8[262144]{0}', space=vmem, size = 0x40000, scoped, tag = 'input window, operand 3, single buffered']
    #allocation8 [shape = 'u8[65536]{0}', space=vmem, size = 0x10000, scoped, tag = 'input window, operand 5, single buffered']
    #allocation9 [shape = 's32[1]{0}', space=sflag, size = 0x4, scoped, tag = 'scoped memory for tagger_forward.1']
    #allocation10 [shape = 'u8[4096]{0}', space=vmem, size = 0x1000, scoped, tag = 'output window, operand 0, single buffered']
    %12 = vsyncpa [#allocation3], 0
    %13 = vsyncpa [#allocation6], 0
    %14 = vsyncpa [#allocation9], 0
    %15 = vsyncpa [#allocation4], 0
    // Predicated region
    $region2: #{tagger_forward.1} parent=1 // pred_check
      _
    $region3: #{tagger_forward.1} parent=1 // pred_check_branch
      %17 = sbr.rel (0) target = $region5
    $region4: #{tagger_forward.1} parent=1 // pred_region
      _
    $region5: #{tagger_forward.1} parent=1 // pred_fallthru
      _
    // Predicated region
    $region6: #{tagger_forward.1} parent=1 // pred_check
      _
    $region7: #{tagger_forward.1} parent=1 // pred_check_branch
      %19 = sbr.rel (0) target = $region9
    $region8: #{tagger_forward.1} parent=1 // pred_region
      %s21 = ssub.s32 2048, 2048
      %22 = vsyncadd [#allocation3], %s21
      %s23 = sshll.u32 [#allocation2], 4
      %s24 = int_to_ptr.vmem [resolvable:$true] %s23
      %29 = dma.hbm_to_vmem [thread:$0]  %s1, 2048, %s24, [#allocation3], 128, 128, 8
    $region9: #{tagger_forward.1} parent=1 // pred_fallthru
      _
    // Predicated region
    $region10: #{tagger_forward.1} parent=1 // pred_check
      _
    $region11: #{tagger_forward.1} parent=1 // pred_check_branch
      %31 = sbr.rel (0) target = $region13
    $region12: #{tagger_forward.1} parent=1 // pred_region
      %s33 = ssub.s32 8192, 8192
      %34 = vsyncadd [#allocation6], %s33
      %s35 = sshll.u32 [#allocation5], 4
      %s36 = int_to_ptr.vmem [resolvable:$true] %s35
      %41 = dma.hbm_to_vmem [thread:$0]  %s2, 8192, %s36, [#allocation6], 512, 512, 32
    $region13: #{tagger_forward.1} parent=1 // pred_fallthru
      _
    // Predicated region
    $region14: #{tagger_forward.1} parent=1 // pred_check
      _
    $region15: #{tagger_forward.1} parent=1 // pred_check_branch
      %43 = sbr.rel (0) target = $region17
    $region16: #{tagger_forward.1} parent=1 // pred_region
      %s45 = ssub.s32 8192, 8192
      %46 = vsyncadd [#allocation6], %s45
      %s47 = sshll.u32 [#allocation7], 4
      %s48 = int_to_ptr.vmem [resolvable:$true] %s47
      %53 = dma.hbm_to_vmem [thread:$0]  %s3, 8192, %s48, [#allocation6], 512, 512, 32
    $region17: #{tagger_forward.1} parent=1 // pred_fallthru
      _
    // Predicated region
    $region18: #{tagger_forward.1} parent=1 // pred_check
      _
    $region19: #{tagger_forward.1} parent=1 // pred_check_branch
      %55 = sbr.rel (0) target = $region21
    $region20: #{tagger_forward.1} parent=1 // pred_region
      _
    $region21: #{tagger_forward.1} parent=1 // pred_fallthru
      _
    // Predicated region
    $region22: #{tagger_forward.1} parent=1 // pred_check
      _
    $region23: #{tagger_forward.1} parent=1 // pred_check_branch
      %57 = sbr.rel (0) target = $region25
    $region24: #{tagger_forward.1} parent=1 // pred_region
      %s59 = ssub.s32 2048, 2048
      %60 = vsyncadd [#allocation9], %s59
      %s61 = sshll.u32 [#allocation8], 4
      %s62 = int_to_ptr.vmem [resolvable:$true] %s61
      %67 = dma.hbm_to_vmem [thread:$0]  %s5, 2048, %s62, [#allocation9], 128, 128, 8
    $region25: #{tagger_forward.1} parent=1 // pred_fallthru
      _
    // Predicated region
    $region26: #{tagger_forward.1} parent=1 // pred_check
      _
    $region27: #{tagger_forward.1} parent=1 // pred_check_branch
      %69 = sbr.rel (0) target = $region29
    $region28: #{tagger_forward.1} parent=1 // pred_region
      _
    $region29: #{tagger_forward.1} parent=1 // pred_fallthru
      _
    // Predicated region
    $region30: #{tagger_forward.1} parent=1 // pred_check
      _
    $region31: #{tagger_forward.1} parent=1 // pred_check_branch
      %71 = sbr.rel (0) target = $region33
    $region32: #{tagger_forward.1} parent=1 // pred_region
      %72 = dma.done [#allocation3], 2048
    $region33: #{tagger_forward.1} parent=1 // pred_fallthru
      _
    // Predicated region
    $region34: #{tagger_forward.1} parent=1 // pred_check
      _
    $region35: #{tagger_forward.1} parent=1 // pred_check_branch
      %74 = sbr.rel (0) target = $region37
    $region36: #{tagger_forward.1} parent=1 // pred_region
      %75 = dma.done [#allocation6], 8192
    $region37: #{tagger_forward.1} parent=1 // pred_fallthru
      _
    // Predicated region
    $region38: #{tagger_forward.1} parent=1 // pred_check
      _
    $region39: #{tagger_forward.1} parent=1 // pred_check_branch
      %77 = sbr.rel (0) target = $region41
    $region40: #{tagger_forward.1} parent=1 // pred_region
      %78 = dma.done [#allocation6], 8192
    $region41: #{tagger_forward.1} parent=1 // pred_fallthru
      _
    // Predicated region
    $region42: #{tagger_forward.1} parent=1 // pred_check
      _
    $region43: #{tagger_forward.1} parent=1 // pred_check_branch
      %80 = sbr.rel (0) target = $region45
    $region44: #{tagger_forward.1} parent=1 // pred_region
      %81 = dma.done [#allocation9], 2048
    $region45: #{tagger_forward.1} parent=1 // pred_fallthru
      _
    %v82 = vld [vmem:[%s0] sm:$0xff]
    %v83 = vlaneseq
    %v84 = vand.u32 %v83, 127
    %85 = vset.pattern.permute.xlu0 0
    %86 = vperm.xlu0 %85, %v82
    %v87 = vpop.permute.xlu0 %86
    %vm88 = vcmp.eq.s32.totalorder %v84, %v87
    %v89 = vsel %vm88, 1, 0
    %v90 = vcvt.s32.f32 %v89
    %v91 = vld [vmem:[#allocation2] sm:$0xff]
    %v92 = vld [vmem:[#allocation2 + $0x8] sm:$0xff]
    %v93 = vld [vmem:[#allocation2 + $0x10] sm:$0xff]
    %v94 = vld [vmem:[#allocation2 + $0x18] sm:$0xff]
    %v95 = vld [vmem:[#allocation2 + $0x20] sm:$0xff]
    %v96 = vld [vmem:[#allocation2 + $0x28] sm:$0xff]
    %v97 = vld [vmem:[#allocation2 + $0x30] sm:$0xff]
    %v98 = vld [vmem:[#allocation2 + $0x38] sm:$0xff]
    %v99 = vld [vmem:[#allocation2 + $0x40] sm:$0xff]
    %v100 = vld [vmem:[#allocation2 + $0x48] sm:$0xff]
    %v101 = vld [vmem:[#allocation2 + $0x50] sm:$0xff]
    %v102 = vld [vmem:[#allocation2 + $0x58] sm:$0xff]
    %v103 = vld [vmem:[#allocation2 + $0x60] sm:$0xff]
    %v104 = vld [vmem:[#allocation2 + $0x68] sm:$0xff]
    %v105 = vld [vmem:[#allocation2 + $0x70] sm:$0xff]
    %v106 = vld [vmem:[#allocation2 + $0x78] sm:$0xff]
    %107 = vmatprep.subr.mxu0 0.0
    %108 = vmatpush1.msra.mxu0 %v106
    %109 = vmatprep.subr.mxu0 0.0
    %110 = vmatpush1.msra.mxu0 %v105
    %111 = vmatprep.subr.mxu0 0.0
    %112 = vmatpush1.msra.mxu0 %v104
    %113 = vmatprep.subr.mxu0 0.0
    %114 = vmatpush1.msra.mxu0 %v103
    %115 = vmatprep.subr.mxu0 0.0
    %116 = vmatpush1.msra.mxu0 %v102
    %117 = vmatprep.subr.mxu0 0.0
    %118 = vmatpush1.msra.mxu0 %v101
    %119 = vmatprep.subr.mxu0 0.0
    %120 = vmatpush1.msra.mxu0 %v100
    %121 = vmatprep.subr.mxu0 0.0
    %122 = vmatpush1.msra.mxu0 %v99
    %123 = vmatprep.subr.mxu0 0.0
    %124 = vmatpush1.msra.mxu0 %v98
    %125 = vmatprep.subr.mxu0 0.0
    %126 = vmatpush1.msra.mxu0 %v97
    %127 = vmatprep.subr.mxu0 0.0
    %128 = vmatpush1.msra.mxu0 %v96
    %129 = vmatprep.subr.mxu0 0.0
    %130 = vmatpush1.msra.mxu0 %v95
    %131 = vmatprep.subr.mxu0 0.0
    %132 = vmatpush1.msra.mxu0 %v94
    %133 = vmatprep.subr.mxu0 0.0
    %134 = vmatpush1.msra.mxu0 %v93
    %135 = vmatprep.subr.mxu0 0.0
    %136 = vmatpush1.msra.mxu0 %v92
    %137 = vmatprep.subr.mxu0 0.0
    %138 = vmatpush1.msra.mxu0 %v91
    %139 = vmatprep.subr.mxu0 0.0
    %140 = vmatpush2.msra.mxu0 0.0
    %141 = vmatprep.subr.mxu0 0.0
    %142 = vmatpush2.msra.mxu0 0.0
    %143 = vmatprep.subr.mxu0 0.0
    %144 = vmatpush2.msra.mxu0 0.0
    %145 = vmatprep.subr.mxu0 0.0
    %146 = vmatpush2.msra.mxu0 0.0
    %147 = vmatprep.subr.mxu0 0.0
    %148 = vmatpush2.msra.mxu0 0.0
    %149 = vmatprep.subr.mxu0 0.0
    %150 = vmatpush2.msra.mxu0 0.0
    %151 = vmatprep.subr.mxu0 0.0
    %152 = vmatpush2.msra.mxu0 0.0
    %153 = vmatprep.subr.mxu0 0.0
    %154 = vmatpush2.msra.mxu0 0.0
    %155 = vmatprep.subr.mxu0 0.0
    %156 = vmatpush2.msra.mxu0 0.0
    %157 = vmatprep.subr.mxu0 0.0
    %158 = vmatpush2.msra.mxu0 0.0
    %159 = vmatprep.subr.mxu0 0.0
    %160 = vmatpush2.msra.mxu0 0.0
    %161 = vmatprep.subr.mxu0 0.0
    %162 = vmatpush2.msra.mxu0 0.0
    %163 = vmatprep.subr.mxu0 0.0
    %164 = vmatpush2.msra.mxu0 0.0
    %165 = vmatprep.subr.mxu0 0.0
    %166 = vmatpush2.msra.mxu0 0.0
    %167 = vmatprep.subr.mxu0 0.0
    %168 = vmatpush2.msra.mxu0 0.0
    %169 = vmatprep.subr.mxu0 0.0
    %170 = vmatpush2.msra.mxu0 0.0
    %171 = vmatprep.mubr.f32.mxu0 0.0
    %172 = vmatmul.mubr.f32.gmra.mxu0 %v90
    %v173 = vpop.f32.mrf.mxu0
    %v174 = vadd.f32 0.0, %v173
    %v175 = vpop.f32.mrf.mxu0
    %176 = vdwg.mxu0
    %v177 = vld [vmem:[#allocation5] sm:$0xff]
    %v178 = vld [vmem:[#allocation5 + $0x8] sm:$0xff]
    %v179 = vld [vmem:[#allocation5 + $0x10] sm:$0xff]
    %v180 = vld [vmem:[#allocation5 + $0x18] sm:$0xff]
    %v181 = vld [vmem:[#allocation5 + $0x20] sm:$0xff]
    %v182 = vld [vmem:[#allocation5 + $0x28] sm:$0xff]
    %v183 = vld [vmem:[#allocation5 + $0x30] sm:$0xff]
    %v184 = vld [vmem:[#allocation5 + $0x38] sm:$0xff]
    %v185 = vld [vmem:[#allocation5 + $0x40] sm:$0xff]
    %v186 = vld [vmem:[#allocation5 + $0x48] sm:$0xff]
    %v187 = vld [vmem:[#allocation5 + $0x50] sm:$0xff]
    %v188 = vld [vmem:[#allocation5 + $0x58] sm:$0xff]
    %v189 = vld [vmem:[#allocation5 + $0x60] sm:$0xff]
    %v190 = vld [vmem:[#allocation5 + $0x68] sm:$0xff]
    %v191 = vld [vmem:[#allocation5 + $0x70] sm:$0xff]
    %v192 = vld [vmem:[#allocation5 + $0x78] sm:$0xff]
    %v193 = vld [vmem:[#allocation5 + $0x80] sm:$0xff]
    %v194 = vld [vmem:[#allocation5 + $0x88] sm:$0xff]
    %v195 = vld [vmem:[#allocation5 + $0x90] sm:$0xff]
    %v196 = vld [vmem:[#allocation5 + $0x98] sm:$0xff]
    %v197 = vld [vmem:[#allocation5 + $0xa0] sm:$0xff]
    %v198 = vld [vmem:[#allocation5 + $0xa8] sm:$0xff]
    %v199 = vld [vmem:[#allocation5 + $0xb0] sm:$0xff]
    %v200 = vld [vmem:[#allocation5 + $0xb8] sm:$0xff]
    %v201 = vld [vmem:[#allocation5 + $0xc0] sm:$0xff]
    %v202 = vld [vmem:[#allocation5 + $0xc8] sm:$0xff]
    %v203 = vld [vmem:[#allocation5 + $0xd0] sm:$0xff]
    %v204 = vld [vmem:[#allocation5 + $0xd8] sm:$0xff]
    %v205 = vld [vmem:[#allocation5 + $0xe0] sm:$0xff]
    %v206 = vld [vmem:[#allocation5 + $0xe8] sm:$0xff]
    %v207 = vld [vmem:[#allocation5 + $0xf0] sm:$0xff]
    %v208 = vld [vmem:[#allocation5 + $0xf8] sm:$0xff]
    %v209 = vld [vmem:[#allocation5 + $0x100] sm:$0xff]
    %v210 = vld [vmem:[#allocation5 + $0x108] sm:$0xff]
    %v211 = vld [vmem:[#allocation5 + $0x110] sm:$0xff]
    %v212 = vld [vmem:[#allocation5 + $0x118] sm:$0xff]
    %v213 = vld [vmem:[#allocation5 + $0x120] sm:$0xff]
    %v214 = vld [vmem:[#allocation5 + $0x128] sm:$0xff]
    %v215 = vld [vmem:[#allocation5 + $0x130] sm:$0xff]
    %v216 = vld [vmem:[#allocation5 + $0x138] sm:$0xff]
    %v217 = vld [vmem:[#allocation5 + $0x140] sm:$0xff]
    %v218 = vld [vmem:[#allocation5 + $0x148] sm:$0xff]
    %v219 = vld [vmem:[#allocation5 + $0x150] sm:$0xff]
    %v220 = vld [vmem:[#allocation5 + $0x158] sm:$0xff]
    %v221 = vld [vmem:[#allocation5 + $0x160] sm:$0xff]
    %v222 = vld [vmem:[#allocation5 + $0x168] sm:$0xff]
    %v223 = vld [vmem:[#allocation5 + $0x170] sm:$0xff]
    %v224 = vld [vmem:[#allocation5 + $0x178] sm:$0xff]
    %v225 = vld [vmem:[#allocation5 + $0x180] sm:$0xff]
    %v226 = vld [vmem:[#allocation5 + $0x188] sm:$0xff]
    %v227 = vld [vmem:[#allocation5 + $0x190] sm:$0xff]
    %v228 = vld [vmem:[#allocation5 + $0x198] sm:$0xff]
    %v229 = vld [vmem:[#allocation5 + $0x1a0] sm:$0xff]
    %v230 = vld [vmem:[#allocation5 + $0x1a8] sm:$0xff]
    %v231 = vld [vmem:[#allocation5 + $0x1b0] sm:$0xff]
    %v232 = vld [vmem:[#allocation5 + $0x1b8] sm:$0xff]
    %v233 = vld [vmem:[#allocation5 + $0x1c0] sm:$0xff]
    %v234 = vld [vmem:[#allocation5 + $0x1c8] sm:$0xff]
    %v235 = vld [vmem:[#allocation5 + $0x1d0] sm:$0xff]
    %v236 = vld [vmem:[#allocation5 + $0x1d8] sm:$0xff]
    %v237 = vld [vmem:[#allocation5 + $0x1e0] sm:$0xff]
    %v238 = vld [vmem:[#allocation5 + $0x1e8] sm:$0xff]
    %v239 = vld [vmem:[#allocation5 + $0x1f0] sm:$0xff]
    %v240 = vld [vmem:[#allocation5 + $0x1f8] sm:$0xff]
    %v241 = vld [vmem:[%s4] sm:$0xf]
    %v243 = vlaneseq
    %v244 = vshrl.u32 %v243, 7
    %v245 = vsub.s32 0, %v244
    %v246 = vrot.slane %v241, %v245
    %v247 = vlaneseq
    %v248 = vshrl.u32 %v247, 7
    %v249 = vsub.s32 1, %v248
    %v250 = vrot.slane %v241, %v249
    %v251 = vlaneseq
    %v252 = vshrl.u32 %v251, 7
    %v253 = vsub.s32 2, %v252
    %v254 = vrot.slane %v241, %v253
    %v255 = vlaneseq
    %v256 = vshrl.u32 %v255, 7
    %v257 = vsub.s32 3, %v256
    %v258 = vrot.slane %v241, %v257
    %263 = vmatprep.subr.mxu0 %v238
    %264 = vmatpush1.msra.mxu0 %v237
    %265 = vmatprep.subr.mxu0 %v234
    %266 = vmatpush1.msra.mxu0 %v233
    %267 = vmatprep.subr.mxu0 %v230
    %268 = vmatpush1.msra.mxu0 %v229
    %269 = vmatprep.subr.mxu0 %v226
    %270 = vmatpush1.msra.mxu0 %v225
    %271 = vmatprep.subr.mxu0 %v222
    %272 = vmatpush1.msra.mxu0 %v221
    %273 = vmatprep.subr.mxu0 %v218
    %274 = vmatpush1.msra.mxu0 %v217
    %275 = vmatprep.subr.mxu0 %v214
    %276 = vmatpush1.msra.mxu0 %v213
    %277 = vmatprep.subr.mxu0 %v210
    %278 = vmatpush1.msra.mxu0 %v209
    %279 = vmatprep.subr.mxu0 %v206
    %280 = vmatpush1.msra.mxu0 %v205
    %281 = vmatprep.subr.mxu0 %v202
    %282 = vmatpush1.msra.mxu0 %v201
    %283 = vmatprep.subr.mxu0 %v198
    %284 = vmatpush1.msra.mxu0 %v197
    %285 = vmatprep.subr.mxu0 %v194
    %286 = vmatpush1.msra.mxu0 %v193
    %287 = vmatprep.subr.mxu0 %v190
    %288 = vmatpush1.msra.mxu0 %v189
    %289 = vmatprep.subr.mxu0 %v186
    %290 = vmatpush1.msra.mxu0 %v185
    %291 = vmatprep.subr.mxu0 %v182
    %292 = vmatpush1.msra.mxu0 %v181
    %293 = vmatprep.subr.mxu0 %v178
    %294 = vmatpush1.msra.mxu0 %v177
    %295 = vmatprep.subr.mxu0 0.0
    %296 = vmatpush2.msra.mxu0 0.0
    %297 = vmatprep.subr.mxu0 0.0
    %298 = vmatpush2.msra.mxu0 0.0
    %299 = vmatprep.subr.mxu0 0.0
    %300 = vmatpush2.msra.mxu0 0.0
    %301 = vmatprep.subr.mxu0 0.0
    %302 = vmatpush2.msra.mxu0 0.0
    %303 = vmatprep.subr.mxu0 0.0
    %304 = vmatpush2.msra.mxu0 0.0
    %305 = vmatprep.subr.mxu0 0.0
    %306 = vmatpush2.msra.mxu0 0.0
    %307 = vmatprep.subr.mxu0 0.0
    %308 = vmatpush2.msra.mxu0 0.0
    %309 = vmatprep.subr.mxu0 0.0
    %310 = vmatpush2.msra.mxu0 0.0
    %311 = vmatprep.subr.mxu0 0.0
    %312 = vmatpush2.msra.mxu0 0.0
    %313 = vmatprep.subr.mxu0 0.0
    %314 = vmatpush2.msra.mxu0 0.0
    %315 = vmatprep.subr.mxu0 0.0
    %316 = vmatpush2.msra.mxu0 0.0
    %317 = vmatprep.subr.mxu0 0.0
    %318 = vmatpush2.msra.mxu0 0.0
    %319 = vmatprep.subr.mxu0 0.0
    %320 = vmatpush2.msra.mxu0 0.0
    %321 = vmatprep.subr.mxu0 0.0
    %322 = vmatpush2.msra.mxu0 0.0
    %323 = vmatprep.subr.mxu0 0.0
    %324 = vmatpush2.msra.mxu0 0.0
    %325 = vmatprep.subr.mxu0 0.0
    %326 = vmatpush2.msra.mxu0 0.0
    %327 = vmatprep.mubr.f32.mxu0 0.0
    %328 = vmatmul.mubr.f32.gmra.mxu0 %v174
    %v329 = vpop.f32.mrf.mxu0
    %v330 = vadd.f32 %v246, %v329
    %v331 = vpop.f32.mrf.mxu0
    %v332 = vadd.f32 %v250, %v331
    %333 = vdwg.mxu0
    %334 = vmatprep.subr.mxu0 %v240
    %335 = vmatpush1.msra.mxu0 %v239
    %336 = vmatprep.subr.mxu0 %v236
    %337 = vmatpush1.msra.mxu0 %v235
    %338 = vmatprep.subr.mxu0 %v232
    %339 = vmatpush1.msra.mxu0 %v231
    %340 = vmatprep.subr.mxu0 %v228
    %341 = vmatpush1.msra.mxu0 %v227
    %342 = vmatprep.subr.mxu0 %v224
    %343 = vmatpush1.msra.mxu0 %v223
    %344 = vmatprep.subr.mxu0 %v220
    %345 = vmatpush1.msra.mxu0 %v219
    %346 = vmatprep.subr.mxu0 %v216
    %347 = vmatpush1.msra.mxu0 %v215
    %348 = vmatprep.subr.mxu0 %v212
    %349 = vmatpush1.msra.mxu0 %v211
    %350 = vmatprep.subr.mxu0 %v208
    %351 = vmatpush1.msra.mxu0 %v207
    %352 = vmatprep.subr.mxu0 %v204
    %353 = vmatpush1.msra.mxu0 %v203
    %354 = vmatprep.subr.mxu0 %v200
    %355 = vmatpush1.msra.mxu0 %v199
    %356 = vmatprep.subr.mxu0 %v196
    %357 = vmatpush1.msra.mxu0 %v195
    %358 = vmatprep.subr.mxu0 %v192
    %359 = vmatpush1.msra.mxu0 %v191
    %360 = vmatprep.subr.mxu0 %v188
    %361 = vmatpush1.msra.mxu0 %v187
    %362 = vmatprep.subr.mxu0 %v184
    %363 = vmatpush1.msra.mxu0 %v183
    %364 = vmatprep.subr.mxu0 %v180
    %365 = vmatpush1.msra.mxu0 %v179
    %366 = vmatprep.subr.mxu0 0.0
    %367 = vmatpush2.msra.mxu0 0.0
    %368 = vmatprep.subr.mxu0 0.0
    %369 = vmatpush2.msra.mxu0 0.0
    %370 = vmatprep.subr.mxu0 0.0
    %371 = vmatpush2.msra.mxu0 0.0
    %372 = vmatprep.subr.mxu0 0.0
    %373 = vmatpush2.msra.mxu0 0.0
    %374 = vmatprep.subr.mxu0 0.0
    %375 = vmatpush2.msra.mxu0 0.0
    %376 = vmatprep.subr.mxu0 0.0
    %377 = vmatpush2.msra.mxu0 0.0
    %378 = vmatprep.subr.mxu0 0.0
    %379 = vmatpush2.msra.mxu0 0.0
    %380 = vmatprep.subr.mxu0 0.0
    %381 = vmatpush2.msra.mxu0 0.0
    %382 = vmatprep.subr.mxu0 0.0
    %383 = vmatpush2.msra.mxu0 0.0
    %384 = vmatprep.subr.mxu0 0.0
    %385 = vmatpush2.msra.mxu0 0.0
    %386 = vmatprep.subr.mxu0 0.0
    %387 = vmatpush2.msra.mxu0 0.0
    %388 = vmatprep.subr.mxu0 0.0
    %389 = vmatpush2.msra.mxu0 0.0
    %390 = vmatprep.subr.mxu0 0.0
    %391 = vmatpush2.msra.mxu0 0.0
    %392 = vmatprep.subr.mxu0 0.0
    %393 = vmatpush2.msra.mxu0 0.0
    %394 = vmatprep.subr.mxu0 0.0
    %395 = vmatpush2.msra.mxu0 0.0
    %396 = vmatprep.subr.mxu0 0.0
    %397 = vmatpush2.msra.mxu0 0.0
    %398 = vmatprep.mubr.f32.mxu0 0.0
    %399 = vmatmul.mubr.f32.gmra.mxu0 %v174
    %v400 = vpop.f32.mrf.mxu0
    %v401 = vadd.f32 %v254, %v400
    %v402 = vpop.f32.mrf.mxu0
    %v403 = vadd.f32 %v258, %v402
    %404 = vdwg.mxu0
    %v405 = vld [vmem:[#allocation7] sm:$0xff]
    %v406 = vld [vmem:[#allocation7 + $0x8] sm:$0xff]
    %v407 = vld [vmem:[#allocation7 + $0x10] sm:$0xff]
    %v408 = vld [vmem:[#allocation7 + $0x18] sm:$0xff]
    %v409 = vld [vmem:[#allocation7 + $0x20] sm:$0xff]
    %v410 = vld [vmem:[#allocation7 + $0x28] sm:$0xff]
    %v411 = vld [vmem:[#allocation7 + $0x30] sm:$0xff]
    %v412 = vld [vmem:[#allocation7 + $0x38] sm:$0xff]
    %v413 = vld [vmem:[#allocation7 + $0x40] sm:$0xff]
    %v414 = vld [vmem:[#allocation7 + $0x48] sm:$0xff]
    %v415 = vld [vmem:[#allocation7 + $0x50] sm:$0xff]
    %v416 = vld [vmem:[#allocation7 + $0x58] sm:$0xff]
    %v417 = vld [vmem:[#allocation7 + $0x60] sm:$0xff]
    %v418 = vld [vmem:[#allocation7 + $0x68] sm:$0xff]
    %v419 = vld [vmem:[#allocation7 + $0x70] sm:$0xff]
    %v420 = vld [vmem:[#allocation7 + $0x78] sm:$0xff]
    %v421 = vld [vmem:[#allocation7 + $0x80] sm:$0xff]
    %v422 = vld [vmem:[#allocation7 + $0x88] sm:$0xff]
    %v423 = vld [vmem:[#allocation7 + $0x90] sm:$0xff]
    %v424 = vld [vmem:[#allocation7 + $0x98] sm:$0xff]
    %v425 = vld [vmem:[#allocation7 + $0xa0] sm:$0xff]
    %v426 = vld [vmem:[#allocation7 + $0xa8] sm:$0xff]
    %v427 = vld [vmem:[#allocation7 + $0xb0] sm:$0xff]
    %v428 = vld [vmem:[#allocation7 + $0xb8] sm:$0xff]
    %v429 = vld [vmem:[#allocation7 + $0xc0] sm:$0xff]
    %v430 = vld [vmem:[#allocation7 + $0xc8] sm:$0xff]
    %v431 = vld [vmem:[#allocation7 + $0xd0] sm:$0xff]
    %v432 = vld [vmem:[#allocation7 + $0xd8] sm:$0xff]
    %v433 = vld [vmem:[#allocation7 + $0xe0] sm:$0xff]
    %v434 = vld [vmem:[#allocation7 + $0xe8] sm:$0xff]
    %v435 = vld [vmem:[#allocation7 + $0xf0] sm:$0xff]
    %v436 = vld [vmem:[#allocation7 + $0xf8] sm:$0xff]
    %v437 = vld [vmem:[#allocation7 + $0x100] sm:$0xff]
    %v438 = vld [vmem:[#allocation7 + $0x108] sm:$0xff]
    %v439 = vld [vmem:[#allocation7 + $0x110] sm:$0xff]
    %v440 = vld [vmem:[#allocation7 + $0x118] sm:$0xff]
    %v441 = vld [vmem:[#allocation7 + $0x120] sm:$0xff]
    %v442 = vld [vmem:[#allocation7 + $0x128] sm:$0xff]
    %v443 = vld [vmem:[#allocation7 + $0x130] sm:$0xff]
    %v444 = vld [vmem:[#allocation7 + $0x138] sm:$0xff]
    %v445 = vld [vmem:[#allocation7 + $0x140] sm:$0xff]
    %v446 = vld [vmem:[#allocation7 + $0x148] sm:$0xff]
    %v447 = vld [vmem:[#allocation7 + $0x150] sm:$0xff]
    %v448 = vld [vmem:[#allocation7 + $0x158] sm:$0xff]
    %v449 = vld [vmem:[#allocation7 + $0x160] sm:$0xff]
    %v450 = vld [vmem:[#allocation7 + $0x168] sm:$0xff]
    %v451 = vld [vmem:[#allocation7 + $0x170] sm:$0xff]
    %v452 = vld [vmem:[#allocation7 + $0x178] sm:$0xff]
    %v453 = vld [vmem:[#allocation7 + $0x180] sm:$0xff]
    %v454 = vld [vmem:[#allocation7 + $0x188] sm:$0xff]
    %v455 = vld [vmem:[#allocation7 + $0x190] sm:$0xff]
    %v456 = vld [vmem:[#allocation7 + $0x198] sm:$0xff]
    %v457 = vld [vmem:[#allocation7 + $0x1a0] sm:$0xff]
    %v458 = vld [vmem:[#allocation7 + $0x1a8] sm:$0xff]
    %v459 = vld [vmem:[#allocation7 + $0x1b0] sm:$0xff]
    %v460 = vld [vmem:[#allocation7 + $0x1b8] sm:$0xff]
    %v461 = vld [vmem:[#allocation7 + $0x1c0] sm:$0xff]
    %v462 = vld [vmem:[#allocation7 + $0x1c8] sm:$0xff]
    %v463 = vld [vmem:[#allocation7 + $0x1d0] sm:$0xff]
    %v464 = vld [vmem:[#allocation7 + $0x1d8] sm:$0xff]
    %v465 = vld [vmem:[#allocation7 + $0x1e0] sm:$0xff]
    %v466 = vld [vmem:[#allocation7 + $0x1e8] sm:$0xff]
    %v467 = vld [vmem:[#allocation7 + $0x1f0] sm:$0xff]
    %v468 = vld [vmem:[#allocation7 + $0x1f8] sm:$0xff]
    %469 = vmatprep.subr.mxu0 %v466
    %470 = vmatpush1.msra.mxu0 %v465
    %471 = vmatprep.subr.mxu0 %v462
    %472 = vmatpush1.msra.mxu0 %v461
    %473 = vmatprep.subr.mxu0 %v458
    %474 = vmatpush1.msra.mxu0 %v457
    %475 = vmatprep.subr.mxu0 %v454
    %476 = vmatpush1.msra.mxu0 %v453
    %477 = vmatprep.subr.mxu0 %v450
    %478 = vmatpush1.msra.mxu0 %v449
    %479 = vmatprep.subr.mxu0 %v446
    %480 = vmatpush1.msra.mxu0 %v445
    %481 = vmatprep.subr.mxu0 %v442
    %482 = vmatpush1.msra.mxu0 %v441
    %483 = vmatprep.subr.mxu0 %v438
    %484 = vmatpush1.msra.mxu0 %v437
    %485 = vmatprep.subr.mxu0 %v434
    %486 = vmatpush1.msra.mxu0 %v433
    %487 = vmatprep.subr.mxu0 %v430
    %488 = vmatpush1.msra.mxu0 %v429
    %489 = vmatprep.subr.mxu0 %v426
    %490 = vmatpush1.msra.mxu0 %v425
    %491 = vmatprep.subr.mxu0 %v422
    %492 = vmatpush1.msra.mxu0 %v421
    %493 = vmatprep.subr.mxu0 %v418
    %494 = vmatpush1.msra.mxu0 %v417
    %495 = vmatprep.subr.mxu0 %v414
    %496 = vmatpush1.msra.mxu0 %v413
    %497 = vmatprep.subr.mxu0 %v410
    %498 = vmatpush1.msra.mxu0 %v409
    %499 = vmatprep.subr.mxu0 %v406
    %500 = vmatpush1.msra.mxu0 %v405
    %501 = vmatprep.subr.mxu0 0.0
    %502 = vmatpush2.msra.mxu0 0.0
    %503 = vmatprep.subr.mxu0 0.0
    %504 = vmatpush2.msra.mxu0 0.0
    %505 = vmatprep.subr.mxu0 0.0
    %506 = vmatpush2.msra.mxu0 0.0
    %507 = vmatprep.subr.mxu0 0.0
    %508 = vmatpush2.msra.mxu0 0.0
    %509 = vmatprep.subr.mxu0 0.0
    %510 = vmatpush2.msra.mxu0 0.0
    %511 = vmatprep.subr.mxu0 0.0
    %512 = vmatpush2.msra.mxu0 0.0
    %513 = vmatprep.subr.mxu0 0.0
    %514 = vmatpush2.msra.mxu0 0.0
    %515 = vmatprep.subr.mxu0 0.0
    %516 = vmatpush2.msra.mxu0 0.0
    %517 = vmatprep.subr.mxu0 0.0
    %518 = vmatpush2.msra.mxu0 0.0
    %519 = vmatprep.subr.mxu0 0.0
    %520 = vmatpush2.msra.mxu0 0.0
    %521 = vmatprep.subr.mxu0 0.0
    %522 = vmatpush2.msra.mxu0 0.0
    %523 = vmatprep.subr.mxu0 0.0
    %524 = vmatpush2.msra.mxu0 0.0
    %525 = vmatprep.subr.mxu0 0.0
    %526 = vmatpush2.msra.mxu0 0.0
    %527 = vmatprep.subr.mxu0 0.0
    %528 = vmatpush2.msra.mxu0 0.0
    %529 = vmatprep.subr.mxu0 0.0
    %530 = vmatpush2.msra.mxu0 0.0
    %531 = vmatprep.subr.mxu0 0.0
    %532 = vmatpush2.msra.mxu0 0.0
    %533 = vmatprep.mubr.f32.mxu0 0.0
    %534 = vmatmul.mubr.f32.gmra.mxu0 0.0
    %v535 = vpop.f32.mrf.mxu0
    %v536 = vadd.f32 0.0, %v535
    %v537 = vpop.f32.mrf.mxu0
    %v538 = vadd.f32 0.0, %v537
    %539 = vdwg.mxu0
    %540 = vmatprep.subr.mxu0 %v468
    %541 = vmatpush1.msra.mxu0 %v467
    %542 = vmatprep.subr.mxu0 %v464
    %543 = vmatpush1.msra.mxu0 %v463
    %544 = vmatprep.subr.mxu0 %v460
    %545 = vmatpush1.msra.mxu0 %v459
    %546 = vmatprep.subr.mxu0 %v456
    %547 = vmatpush1.msra.mxu0 %v455
    %548 = vmatprep.subr.mxu0 %v452
    %549 = vmatpush1.msra.mxu0 %v451
    %550 = vmatprep.subr.mxu0 %v448
    %551 = vmatpush1.msra.mxu0 %v447
    %552 = vmatprep.subr.mxu0 %v444
    %553 = vmatpush1.msra.mxu0 %v443
    %554 = vmatprep.subr.mxu0 %v440
    %555 = vmatpush1.msra.mxu0 %v439
    %556 = vmatprep.subr.mxu0 %v436
    %557 = vmatpush1.msra.mxu0 %v435
    %558 = vmatprep.subr.mxu0 %v432
    %559 = vmatpush1.msra.mxu0 %v431
    %560 = vmatprep.subr.mxu0 %v428
    %561 = vmatpush1.msra.mxu0 %v427
    %562 = vmatprep.subr.mxu0 %v424
    %563 = vmatpush1.msra.mxu0 %v423
    %564 = vmatprep.subr.mxu0 %v420
    %565 = vmatpush1.msra.mxu0 %v419
    %566 = vmatprep.subr.mxu0 %v416
    %567 = vmatpush1.msra.mxu0 %v415
    %568 = vmatprep.subr.mxu0 %v412
    %569 = vmatpush1.msra.mxu0 %v411
    %570 = vmatprep.subr.mxu0 %v408
    %571 = vmatpush1.msra.mxu0 %v407
    %572 = vmatprep.subr.mxu0 0.0
    %573 = vmatpush2.msra.mxu0 0.0
    %574 = vmatprep.subr.mxu0 0.0
    %575 = vmatpush2.msra.mxu0 0.0
    %576 = vmatprep.subr.mxu0 0.0
    %577 = vmatpush2.msra.mxu0 0.0
    %578 = vmatprep.subr.mxu0 0.0
    %579 = vmatpush2.msra.mxu0 0.0
    %580 = vmatprep.subr.mxu0 0.0
    %581 = vmatpush2.msra.mxu0 0.0
    %582 = vmatprep.subr.mxu0 0.0
    %583 = vmatpush2.msra.mxu0 0.0
    %584 = vmatprep.subr.mxu0 0.0
    %585 = vmatpush2.msra.mxu0 0.0
    %586 = vmatprep.subr.mxu0 0.0
    %587 = vmatpush2.msra.mxu0 0.0
    %588 = vmatprep.subr.mxu0 0.0
    %589 = vmatpush2.msra.mxu0 0.0
    %590 = vmatprep.subr.mxu0 0.0
    %591 = vmatpush2.msra.mxu0 0.0
    %592 = vmatprep.subr.mxu0 0.0
    %593 = vmatpush2.msra.mxu0 0.0
    %594 = vmatprep.subr.mxu0 0.0
    %595 = vmatpush2.msra.mxu0 0.0
    %596 = vmatprep.subr.mxu0 0.0
    %597 = vmatpush2.msra.mxu0 0.0
    %598 = vmatprep.subr.mxu0 0.0
    %599 = vmatpush2.msra.mxu0 0.0
    %600 = vmatprep.subr.mxu0 0.0
    %601 = vmatpush2.msra.mxu0 0.0
    %602 = vmatprep.subr.mxu0 0.0
    %603 = vmatpush2.msra.mxu0 0.0
    %604 = vmatprep.mubr.f32.mxu0 0.0
    %605 = vmatmul.mubr.f32.gmra.mxu0 0.0
    %v606 = vpop.f32.mrf.mxu0
    %v607 = vadd.f32 0.0, %v606
    %v608 = vpop.f32.mrf.mxu0
    %v609 = vadd.f32 0.0, %v608
    %610 = vdwg.mxu0
    %v611 = vadd.f32 %v330, %v536
    %v612 = vadd.f32 %v332, %v538
    %v613 = vadd.f32 %v401, %v607
    %v614 = vadd.f32 %v403, %v609
    %v615 = vxor.u32 %v611, 2147483648
    %v616 = vmul.f32 %v615, 1.442695
    %v617 = vpow.pop %v616
    %v618 = vadd.f32 %v617, 1.0
    %v619 = vrcp.pop %v618
    %v620 = vmul.f32 1.0, %v619
    %v621 = vxor.u32 %v612, 2147483648
    %v622 = vmul.f32 %v621, 1.442695
    %v623 = vpow.pop %v622
    %v624 = vadd.f32 %v623, 1.0
    %v625 = vrcp.pop %v624
    %v626 = vmul.f32 1.0, %v625
    %v627 = vtanh.pop %v613
    %v628 = vxor.u32 %v614, 2147483648
    %v629 = vmul.f32 %v628, 1.442695
    %v630 = vpow.pop %v629
    %v631 = vadd.f32 %v630, 1.0
    %v632 = vrcp.pop %v631
    %v633 = vmul.f32 1.0, %v632
    %v634 = vmul.f32 %v626, 0.0
    %v635 = vmul.f32 %v620, %v627
    %v636 = vadd.f32 %v634, %v635
    %v637 = vtanh.pop %v636
    %v638 = vmul.f32 %v633, %v637
    %639 = vmatprep.subr.mxu0 %v466
    %640 = vmatpush1.msra.mxu0 %v465
    %641 = vmatprep.subr.mxu0 %v462
    %642 = vmatpush1.msra.mxu0 %v461
    %643 = vmatprep.subr.mxu0 %v458
    %644 = vmatpush1.msra.mxu0 %v457
    %645 = vmatprep.subr.mxu0 %v454
    %646 = vmatpush1.msra.mxu0 %v453
    %647 = vmatprep.subr.mxu0 %v450
    %648 = vmatpush1.msra.mxu0 %v449
    %649 = vmatprep.subr.mxu0 %v446
    %650 = vmatpush1.msra.mxu0 %v445
    %651 = vmatprep.subr.mxu0 %v442
    %652 = vmatpush1.msra.mxu0 %v441
    %653 = vmatprep.subr.mxu0 %v438
    %654 = vmatpush1.msra.mxu0 %v437
    %655 = vmatprep.subr.mxu0 %v434
    %656 = vmatpush1.msra.mxu0 %v433
    %657 = vmatprep.subr.mxu0 %v430
    %658 = vmatpush1.msra.mxu0 %v429
    %659 = vmatprep.subr.mxu0 %v426
    %660 = vmatpush1.msra.mxu0 %v425
    %661 = vmatprep.subr.mxu0 %v422
    %662 = vmatpush1.msra.mxu0 %v421
    %663 = vmatprep.subr.mxu0 %v418
    %664 = vmatpush1.msra.mxu0 %v417
    %665 = vmatprep.subr.mxu0 %v414
    %666 = vmatpush1.msra.mxu0 %v413
    %667 = vmatprep.subr.mxu0 %v410
    %668 = vmatpush1.msra.mxu0 %v409
    %669 = vmatprep.subr.mxu0 %v406
    %670 = vmatpush1.msra.mxu0 %v405
    %671 = vmatprep.subr.mxu0 0.0
    %672 = vmatpush2.msra.mxu0 0.0
    %673 = vmatprep.subr.mxu0 0.0
    %674 = vmatpush2.msra.mxu0 0.0
    %675 = vmatprep.subr.mxu0 0.0
    %676 = vmatpush2.msra.mxu0 0.0
    %677 = vmatprep.subr.mxu0 0.0
    %678 = vmatpush2.msra.mxu0 0.0
    %679 = vmatprep.subr.mxu0 0.0
    %680 = vmatpush2.msra.mxu0 0.0
    %681 = vmatprep.subr.mxu0 0.0
    %682 = vmatpush2.msra.mxu0 0.0
    %683 = vmatprep.subr.mxu0 0.0
    %684 = vmatpush2.msra.mxu0 0.0
    %685 = vmatprep.subr.mxu0 0.0
    %686 = vmatpush2.msra.mxu0 0.0
    %687 = vmatprep.subr.mxu0 0.0
    %688 = vmatpush2.msra.mxu0 0.0
    %689 = vmatprep.subr.mxu0 0.0
    %690 = vmatpush2.msra.mxu0 0.0
    %691 = vmatprep.subr.mxu0 0.0
    %692 = vmatpush2.msra.mxu0 0.0
    %693 = vmatprep.subr.mxu0 0.0
    %694 = vmatpush2.msra.mxu0 0.0
    %695 = vmatprep.subr.mxu0 0.0
    %696 = vmatpush2.msra.mxu0 0.0
    %697 = vmatprep.subr.mxu0 0.0
    %698 = vmatpush2.msra.mxu0 0.0
    %699 = vmatprep.subr.mxu0 0.0
    %700 = vmatpush2.msra.mxu0 0.0
    %701 = vmatprep.subr.mxu0 0.0
    %702 = vmatpush2.msra.mxu0 0.0
    %703 = vmatprep.mubr.f32.mxu0 0.0
    %704 = vmatmul.mubr.f32.gmra.mxu0 %v638
    %v705 = vpop.f32.mrf.mxu0
    %v706 = vadd.f32 0.0, %v705
    %v707 = vpop.f32.mrf.mxu0
    %v708 = vadd.f32 0.0, %v707
    %709 = vdwg.mxu0
    %710 = vmatprep.subr.mxu0 %v468
    %711 = vmatpush1.msra.mxu0 %v467
    %712 = vmatprep.subr.mxu0 %v464
    %713 = vmatpush1.msra.mxu0 %v463
    %714 = vmatprep.subr.mxu0 %v460
    %715 = vmatpush1.msra.mxu0 %v459
    %716 = vmatprep.subr.mxu0 %v456
    %717 = vmatpush1.msra.mxu0 %v455
    %718 = vmatprep.subr.mxu0 %v452
    %719 = vmatpush1.msra.mxu0 %v451
    %720 = vmatprep.subr.mxu0 %v448
    %721 = vmatpush1.msra.mxu0 %v447
    %722 = vmatprep.subr.mxu0 %v444
    %723 = vmatpush1.msra.mxu0 %v443
    %724 = vmatprep.subr.mxu0 %v440
    %725 = vmatpush1.msra.mxu0 %v439
    %726 = vmatprep.subr.mxu0 %v436
    %727 = vmatpush1.msra.mxu0 %v435
    %728 = vmatprep.subr.mxu0 %v432
    %729 = vmatpush1.msra.mxu0 %v431
    %730 = vmatprep.subr.mxu0 %v428
    %731 = vmatpush1.msra.mxu0 %v427
    %732 = vmatprep.subr.mxu0 %v424
    %733 = vmatpush1.msra.mxu0 %v423
    %734 = vmatprep.subr.mxu0 %v420
    %735 = vmatpush1.msra.mxu0 %v419
    %736 = vmatprep.subr.mxu0 %v416
    %737 = vmatpush1.msra.mxu0 %v415
    %738 = vmatprep.subr.mxu0 %v412
    %739 = vmatpush1.msra.mxu0 %v411
    %740 = vmatprep.subr.mxu0 %v408
    %741 = vmatpush1.msra.mxu0 %v407
    %742 = vmatprep.subr.mxu0 0.0
    %743 = vmatpush2.msra.mxu0 0.0
    %744 = vmatprep.subr.mxu0 0.0
    %745 = vmatpush2.msra.mxu0 0.0
    %746 = vmatprep.subr.mxu0 0.0
    %747 = vmatpush2.msra.mxu0 0.0
    %748 = vmatprep.subr.mxu0 0.0
    %749 = vmatpush2.msra.mxu0 0.0
    %750 = vmatprep.subr.mxu0 0.0
    %751 = vmatpush2.msra.mxu0 0.0
    %752 = vmatprep.subr.mxu0 0.0
    %753 = vmatpush2.msra.mxu0 0.0
    %754 = vmatprep.subr.mxu0 0.0
    %755 = vmatpush2.msra.mxu0 0.0
    %756 = vmatprep.subr.mxu0 0.0
    %757 = vmatpush2.msra.mxu0 0.0
    %758 = vmatprep.subr.mxu0 0.0
    %759 = vmatpush2.msra.mxu0 0.0
    %760 = vmatprep.subr.mxu0 0.0
    %761 = vmatpush2.msra.mxu0 0.0
    %762 = vmatprep.subr.mxu0 0.0
    %763 = vmatpush2.msra.mxu0 0.0
    %764 = vmatprep.subr.mxu0 0.0
    %765 = vmatpush2.msra.mxu0 0.0
    %766 = vmatprep.subr.mxu0 0.0
    %767 = vmatpush2.msra.mxu0 0.0
    %768 = vmatprep.subr.mxu0 0.0
    %769 = vmatpush2.msra.mxu0 0.0
    %770 = vmatprep.subr.mxu0 0.0
    %771 = vmatpush2.msra.mxu0 0.0
    %772 = vmatprep.subr.mxu0 0.0
    %773 = vmatpush2.msra.mxu0 0.0
    %774 = vmatprep.mubr.f32.mxu0 0.0
    %775 = vmatmul.mubr.f32.gmra.mxu0 %v638
    %v776 = vpop.f32.mrf.mxu0
    %v777 = vadd.f32 0.0, %v776
    %v778 = vpop.f32.mrf.mxu0
    %v779 = vadd.f32 0.0, %v778
    %780 = vdwg.mxu0
    %v785 = vrot.slane %v706, 7
    %v786 = vrot.slane %v708, 7
    %v787 = vrot.slane %v777, 7
    %v788 = vrot.slane %v779, 7
    %v793 = vadd.f32 %v330, %v785
    %v794 = vadd.f32 %v332, %v786
    %v795 = vadd.f32 %v401, %v787
    %v796 = vadd.f32 %v403, %v788
    %v797 = vxor.u32 %v793, 2147483648
    %v798 = vmul.f32 %v797, 1.442695
    %v799 = vpow.pop %v798
    %v800 = vadd.f32 %v799, 1.0
    %v801 = vrcp.pop %v800
    %v802 = vmul.f32 1.0, %v801
    %v803 = vxor.u32 %v794, 2147483648
    %v804 = vmul.f32 %v803, 1.442695
    %v805 = vpow.pop %v804
    %v806 = vadd.f32 %v805, 1.0
    %v807 = vrcp.pop %v806
    %v808 = vmul.f32 1.0, %v807
    %v809 = vtanh.pop %v795
    %v810 = vxor.u32 %v796, 2147483648
    %v811 = vmul.f32 %v810, 1.442695
    %v812 = vpow.pop %v811
    %v813 = vadd.f32 %v812, 1.0
    %v814 = vrcp.pop %v813
    %v815 = vmul.f32 1.0, %v814
    %v817 = vrot.slane %v636, 7
    %v819 = vmul.f32 %v808, %v817
    %v820 = vmul.f32 %v802, %v809
    %v821 = vadd.f32 %v819, %v820
    %v822 = vtanh.pop %v821
    %v823 = vmul.f32 %v815, %v822
    %v825 = vrot.slane %v823, 1
    %827 = vmatprep.subr.mxu0 %v466
    %828 = vmatpush1.msra.mxu0 %v465
    %829 = vmatprep.subr.mxu0 %v462
    %830 = vmatpush1.msra.mxu0 %v461
    %831 = vmatprep.subr.mxu0 %v458
    %832 = vmatpush1.msra.mxu0 %v457
    %833 = vmatprep.subr.mxu0 %v454
    %834 = vmatpush1.msra.mxu0 %v453
    %835 = vmatprep.subr.mxu0 %v450
    %836 = vmatpush1.msra.mxu0 %v449
    %837 = vmatprep.subr.mxu0 %v446
    %838 = vmatpush1.msra.mxu0 %v445
    %839 = vmatprep.subr.mxu0 %v442
    %840 = vmatpush1.msra.mxu0 %v441
    %841 = vmatprep.subr.mxu0 %v438
    %842 = vmatpush1.msra.mxu0 %v437
    %843 = vmatprep.subr.mxu0 %v434
    %844 = vmatpush1.msra.mxu0 %v433
    %845 = vmatprep.subr.mxu0 %v430
    %846 = vmatpush1.msra.mxu0 %v429
    %847 = vmatprep.subr.mxu0 %v426
    %848 = vmatpush1.msra.mxu0 %v425
    %849 = vmatprep.subr.mxu0 %v422
    %850 = vmatpush1.msra.mxu0 %v421
    %851 = vmatprep.subr.mxu0 %v418
    %852 = vmatpush1.msra.mxu0 %v417
    %853 = vmatprep.subr.mxu0 %v414
    %854 = vmatpush1.msra.mxu0 %v413
    %855 = vmatprep.subr.mxu0 %v410
    %856 = vmatpush1.msra.mxu0 %v409
    %857 = vmatprep.subr.mxu0 %v406
    %858 = vmatpush1.msra.mxu0 %v405
    %859 = vmatprep.subr.mxu0 0.0
    %860 = vmatpush2.msra.mxu0 0.0
    %861 = vmatprep.subr.mxu0 0.0
    %862 = vmatpush2.msra.mxu0 0.0
    %863 = vmatprep.subr.mxu0 0.0
    %864 = vmatpush2.msra.mxu0 0.0
    %865 = vmatprep.subr.mxu0 0.0
    %866 = vmatpush2.msra.mxu0 0.0
    %867 = vmatprep.subr.mxu0 0.0
    %868 = vmatpush2.msra.mxu0 0.0
    %869 = vmatprep.subr.mxu0 0.0
    %870 = vmatpush2.msra.mxu0 0.0
    %871 = vmatprep.subr.mxu0 0.0
    %872 = vmatpush2.msra.mxu0 0.0
    %873 = vmatprep.subr.mxu0 0.0
    %874 = vmatpush2.msra.mxu0 0.0
    %875 = vmatprep.subr.mxu0 0.0
    %876 = vmatpush2.msra.mxu0 0.0
    %877 = vmatprep.subr.mxu0 0.0
    %878 = vmatpush2.msra.mxu0 0.0
    %879 = vmatprep.subr.mxu0 0.0
    %880 = vmatpush2.msra.mxu0 0.0
    %881 = vmatprep.subr.mxu0 0.0
    %882 = vmatpush2.msra.mxu0 0.0
    %883 = vmatprep.subr.mxu0 0.0
    %884 = vmatpush2.msra.mxu0 0.0
    %885 = vmatprep.subr.mxu0 0.0
    %886 = vmatpush2.msra.mxu0 0.0
    %887 = vmatprep.subr.mxu0 0.0
    %888 = vmatpush2.msra.mxu0 0.0
    %889 = vmatprep.subr.mxu0 0.0
    %890 = vmatpush2.msra.mxu0 0.0
    %891 = vmatprep.mubr.f32.mxu0 0.0
    %892 = vmatmul.mubr.f32.gmra.mxu0 %v825
    %v893 = vpop.f32.mrf.mxu0
    %v894 = vadd.f32 0.0, %v893
    %v895 = vpop.f32.mrf.mxu0
    %v896 = vadd.f32 0.0, %v895
    %897 = vdwg.mxu0
    %898 = vmatprep.subr.mxu0 %v468
    %899 = vmatpush1.msra.mxu0 %v467
    %900 = vmatprep.subr.mxu0 %v464
    %901 = vmatpush1.msra.mxu0 %v463
    %902 = vmatprep.subr.mxu0 %v460
    %903 = vmatpush1.msra.mxu0 %v459
    %904 = vmatprep.subr.mxu0 %v456
    %905 = vmatpush1.msra.mxu0 %v455
    %906 = vmatprep.subr.mxu0 %v452
    %907 = vmatpush1.msra.mxu0 %v451
    %908 = vmatprep.subr.mxu0 %v448
    %909 = vmatpush1.msra.mxu0 %v447
    %910 = vmatprep.subr.mxu0 %v444
    %911 = vmatpush1.msra.mxu0 %v443
    %912 = vmatprep.subr.mxu0 %v440
    %913 = vmatpush1.msra.mxu0 %v439
    %914 = vmatprep.subr.mxu0 %v436
    %915 = vmatpush1.msra.mxu0 %v435
    %916 = vmatprep.subr.mxu0 %v432
    %917 = vmatpush1.msra.mxu0 %v431
    %918 = vmatprep.subr.mxu0 %v428
    %919 = vmatpush1.msra.mxu0 %v427
    %920 = vmatprep.subr.mxu0 %v424
    %921 = vmatpush1.msra.mxu0 %v423
    %922 = vmatprep.subr.mxu0 %v420
    %923 = vmatpush1.msra.mxu0 %v419
    %924 = vmatprep.subr.mxu0 %v416
    %925 = vmatpush1.msra.mxu0 %v415
    %926 = vmatprep.subr.mxu0 %v412
    %927 = vmatpush1.msra.mxu0 %v411
    %928 = vmatprep.subr.mxu0 %v408
    %929 = vmatpush1.msra.mxu0 %v407
    %930 = vmatprep.subr.mxu0 0.0
    %931 = vmatpush2.msra.mxu0 0.0
    %932 = vmatprep.subr.mxu0 0.0
    %933 = vmatpush2.msra.mxu0 0.0
    %934 = vmatprep.subr.mxu0 0.0
    %935 = vmatpush2.msra.mxu0 0.0
    %936 = vmatprep.subr.mxu0 0.0
    %937 = vmatpush2.msra.mxu0 0.0
    %938 = vmatprep.subr.mxu0 0.0
    %939 = vmatpush2.msra.mxu0 0.0
    %940 = vmatprep.subr.mxu0 0.0
    %941 = vmatpush2.msra.mxu0 0.0
    %942 = vmatprep.subr.mxu0 0.0
    %943 = vmatpush2.msra.mxu0 0.0
    %944 = vmatprep.subr.mxu0 0.0
    %945 = vmatpush2.msra.mxu0 0.0
    %946 = vmatprep.subr.mxu0 0.0
    %947 = vmatpush2.msra.mxu0 0.0
    %948 = vmatprep.subr.mxu0 0.0
    %949 = vmatpush2.msra.mxu0 0.0
    %950 = vmatprep.subr.mxu0 0.0
    %951 = vmatpush2.msra.mxu0 0.0
    %952 = vmatprep.subr.mxu0 0.0
    %953 = vmatpush2.msra.mxu0 0.0
    %954 = vmatprep.subr.mxu0 0.0
    %955 = vmatpush2.msra.mxu0 0.0
    %956 = vmatprep.subr.mxu0 0.0
    %957 = vmatpush2.msra.mxu0 0.0
    %958 = vmatprep.subr.mxu0 0.0
    %959 = vmatpush2.msra.mxu0 0.0
    %960 = vmatprep.subr.mxu0 0.0
    %961 = vmatpush2.msra.mxu0 0.0
    %962 = vmatprep.mubr.f32.mxu0 0.0
    %963 = vmatmul.mubr.f32.gmra.mxu0 %v825
    %v964 = vpop.f32.mrf.mxu0
    %v965 = vadd.f32 0.0, %v964
    %v966 = vpop.f32.mrf.mxu0
    %v967 = vadd.f32 0.0, %v966
    %968 = vdwg.mxu0
    %v973 = vrot.slane %v894, 6
    %v974 = vrot.slane %v896, 6
    %v975 = vrot.slane %v965, 6
    %v976 = vrot.slane %v967, 6
    %v981 = vadd.f32 %v330, %v973
    %v982 = vadd.f32 %v332, %v974
    %v983 = vadd.f32 %v401, %v975
    %v984 = vadd.f32 %v403, %v976
    %v985 = vxor.u32 %v981, 2147483648
    %v986 = vmul.f32 %v985, 1.442695
    %v987 = vpow.pop %v986
    %v988 = vadd.f32 %v987, 1.0
    %v989 = vrcp.pop %v988
    %v990 = vmul.f32 1.0, %v989
    %v991 = vxor.u32 %v982, 2147483648
    %v992 = vmul.f32 %v991, 1.442695
    %v993 = vpow.pop %v992
    %v994 = vadd.f32 %v993, 1.0
    %v995 = vrcp.pop %v994
    %v996 = vmul.f32 1.0, %v995
    %v997 = vtanh.pop %v983
    %v998 = vxor.u32 %v984, 2147483648
    %v999 = vmul.f32 %v998, 1.442695
    %v1000 = vpow.pop %v999
    %v1001 = vadd.f32 %v1000, 1.0
    %v1002 = vrcp.pop %v1001
    %v1003 = vmul.f32 1.0, %v1002
    %v1005 = vrot.slane %v821, 7
    %v1007 = vmul.f32 %v996, %v1005
    %v1008 = vmul.f32 %v990, %v997
    %v1009 = vadd.f32 %v1007, %v1008
    %v1010 = vtanh.pop %v1009
    %v1011 = vmul.f32 %v1003, %v1010
    %v1013 = vrot.slane %v1011, 2
    %1015 = vmatprep.subr.mxu0 %v466
    %1016 = vmatpush1.msra.mxu0 %v465
    %1017 = vmatprep.subr.mxu0 %v462
    %1018 = vmatpush1.msra.mxu0 %v461
    %1019 = vmatprep.subr.mxu0 %v458
    %1020 = vmatpush1.msra.mxu0 %v457
    %1021 = vmatprep.subr.mxu0 %v454
    %1022 = vmatpush1.msra.mxu0 %v453
    %1023 = vmatprep.subr.mxu0 %v450
    %1024 = vmatpush1.msra.mxu0 %v449
    %1025 = vmatprep.subr.mxu0 %v446
    %1026 = vmatpush1.msra.mxu0 %v445
    %1027 = vmatprep.subr.mxu0 %v442
    %1028 = vmatpush1.msra.mxu0 %v441
    %1029 = vmatprep.subr.mxu0 %v438
    %1030 = vmatpush1.msra.mxu0 %v437
    %1031 = vmatprep.subr.mxu0 %v434
    %1032 = vmatpush1.msra.mxu0 %v433
    %1033 = vmatprep.subr.mxu0 %v430
    %1034 = vmatpush1.msra.mxu0 %v429
    %1035 = vmatprep.subr.mxu0 %v426
    %1036 = vmatpush1.msra.mxu0 %v425
    %1037 = vmatprep.subr.mxu0 %v422
    %1038 = vmatpush1.msra.mxu0 %v421
    %1039 = vmatprep.subr.mxu0 %v418
    %1040 = vmatpush1.msra.mxu0 %v417
    %1041 = vmatprep.subr.mxu0 %v414
    %1042 = vmatpush1.msra.mxu0 %v413
    %1043 = vmatprep.subr.mxu0 %v410
    %1044 = vmatpush1.msra.mxu0 %v409
    %1045 = vmatprep.subr.mxu0 %v406
    %1046 = vmatpush1.msra.mxu0 %v405
    %1047 = vmatprep.subr.mxu0 0.0
    %1048 = vmatpush2.msra.mxu0 0.0
    %1049 = vmatprep.subr.mxu0 0.0
    %1050 = vmatpush2.msra.mxu0 0.0
    %1051 = vmatprep.subr.mxu0 0.0
    %1052 = vmatpush2.msra.mxu0 0.0
    %1053 = vmatprep.subr.mxu0 0.0
    %1054 = vmatpush2.msra.mxu0 0.0
    %1055 = vmatprep.subr.mxu0 0.0
    %1056 = vmatpush2.msra.mxu0 0.0
    %1057 = vmatprep.subr.mxu0 0.0
    %1058 = vmatpush2.msra.mxu0 0.0
    %1059 = vmatprep.subr.mxu0 0.0
    %1060 = vmatpush2.msra.mxu0 0.0
    %1061 = vmatprep.subr.mxu0 0.0
    %1062 = vmatpush2.msra.mxu0 0.0
    %1063 = vmatprep.subr.mxu0 0.0
    %1064 = vmatpush2.msra.mxu0 0.0
    %1065 = vmatprep.subr.mxu0 0.0
    %1066 = vmatpush2.msra.mxu0 0.0
    %1067 = vmatprep.subr.mxu0 0.0
    %1068 = vmatpush2.msra.mxu0 0.0
    %1069 = vmatprep.subr.mxu0 0.0
    %1070 = vmatpush2.msra.mxu0 0.0
    %1071 = vmatprep.subr.mxu0 0.0
    %1072 = vmatpush2.msra.mxu0 0.0
    %1073 = vmatprep.subr.mxu0 0.0
    %1074 = vmatpush2.msra.mxu0 0.0
    %1075 = vmatprep.subr.mxu0 0.0
    %1076 = vmatpush2.msra.mxu0 0.0
    %1077 = vmatprep.subr.mxu0 0.0
    %1078 = vmatpush2.msra.mxu0 0.0
    %1079 = vmatprep.mubr.f32.mxu0 0.0
    %1080 = vmatmul.mubr.f32.gmra.mxu0 %v1013
    %v1081 = vpop.f32.mrf.mxu0
    %v1082 = vadd.f32 0.0, %v1081
    %v1083 = vpop.f32.mrf.mxu0
    %v1084 = vadd.f32 0.0, %v1083
    %1085 = vdwg.mxu0
    %1086 = vmatprep.subr.mxu0 %v468
    %1087 = vmatpush1.msra.mxu0 %v467
    %1088 = vmatprep.subr.mxu0 %v464
    %1089 = vmatpush1.msra.mxu0 %v463
    %1090 = vmatprep.subr.mxu0 %v460
    %1091 = vmatpush1.msra.mxu0 %v459
    %1092 = vmatprep.subr.mxu0 %v456
    %1093 = vmatpush1.msra.mxu0 %v455
    %1094 = vmatprep.subr.mxu0 %v452
    %1095 = vmatpush1.msra.mxu0 %v451
    %1096 = vmatprep.subr.mxu0 %v448
    %1097 = vmatpush1.msra.mxu0 %v447
    %1098 = vmatprep.subr.mxu0 %v444
    %1099 = vmatpush1.msra.mxu0 %v443
    %1100 = vmatprep.subr.mxu0 %v440
    %1101 = vmatpush1.msra.mxu0 %v439
    %1102 = vmatprep.subr.mxu0 %v436
    %1103 = vmatpush1.msra.mxu0 %v435
    %1104 = vmatprep.subr.mxu0 %v432
    %1105 = vmatpush1.msra.mxu0 %v431
    %1106 = vmatprep.subr.mxu0 %v428
    %1107 = vmatpush1.msra.mxu0 %v427
    %1108 = vmatprep.subr.mxu0 %v424
    %1109 = vmatpush1.msra.mxu0 %v423
    %1110 = vmatprep.subr.mxu0 %v420
    %1111 = vmatpush1.msra.mxu0 %v419
    %1112 = vmatprep.subr.mxu0 %v416
    %1113 = vmatpush1.msra.mxu0 %v415
    %1114 = vmatprep.subr.mxu0 %v412
    %1115 = vmatpush1.msra.mxu0 %v411
    %1116 = vmatprep.subr.mxu0 %v408
    %1117 = vmatpush1.msra.mxu0 %v407
    %1118 = vmatprep.subr.mxu0 0.0
    %1119 = vmatpush2.msra.mxu0 0.0
    %1120 = vmatprep.subr.mxu0 0.0
    %1121 = vmatpush2.msra.mxu0 0.0
    %1122 = vmatprep.subr.mxu0 0.0
    %1123 = vmatpush2.msra.mxu0 0.0
    %1124 = vmatprep.subr.mxu0 0.0
    %1125 = vmatpush2.msra.mxu0 0.0
    %1126 = vmatprep.subr.mxu0 0.0
    %1127 = vmatpush2.msra.mxu0 0.0
    %1128 = vmatprep.subr.mxu0 0.0
    %1129 = vmatpush2.msra.mxu0 0.0
    %1130 = vmatprep.subr.mxu0 0.0
    %1131 = vmatpush2.msra.mxu0 0.0
    %1132 = vmatprep.subr.mxu0 0.0
    %1133 = vmatpush2.msra.mxu0 0.0
    %1134 = vmatprep.subr.mxu0 0.0
    %1135 = vmatpush2.msra.mxu0 0.0
    %1136 = vmatprep.subr.mxu0 0.0
    %1137 = vmatpush2.msra.mxu0 0.0
    %1138 = vmatprep.subr.mxu0 0.0
    %1139 = vmatpush2.msra.mxu0 0.0
    %1140 = vmatprep.subr.mxu0 0.0
    %1141 = vmatpush2.msra.mxu0 0.0
    %1142 = vmatprep.subr.mxu0 0.0
    %1143 = vmatpush2.msra.mxu0 0.0
    %1144 = vmatprep.subr.mxu0 0.0
    %1145 = vmatpush2.msra.mxu0 0.0
    %1146 = vmatprep.subr.mxu0 0.0
    %1147 = vmatpush2.msra.mxu0 0.0
    %1148 = vmatprep.subr.mxu0 0.0
    %1149 = vmatpush2.msra.mxu0 0.0
    %1150 = vmatprep.mubr.f32.mxu0 0.0
    %1151 = vmatmul.mubr.f32.gmra.mxu0 %v1013
    %v1152 = vpop.f32.mrf.mxu0
    %v1153 = vadd.f32 0.0, %v1152
    %v1154 = vpop.f32.mrf.mxu0
    %v1155 = vadd.f32 0.0, %v1154
    %1156 = vdwg.mxu0
    %v1161 = vrot.slane %v1082, 5
    %v1162 = vrot.slane %v1084, 5
    %v1163 = vrot.slane %v1153, 5
    %v1164 = vrot.slane %v1155, 5
    %v1169 = vadd.f32 %v330, %v1161
    %v1170 = vadd.f32 %v332, %v1162
    %v1171 = vadd.f32 %v401, %v1163
    %v1172 = vadd.f32 %v403, %v1164
    %v1173 = vxor.u32 %v1169, 2147483648
    %v1174 = vmul.f32 %v1173, 1.442695
    %v1175 = vpow.pop %v1174
    %v1176 = vadd.f32 %v1175, 1.0
    %v1177 = vrcp.pop %v1176
    %v1178 = vmul.f32 1.0, %v1177
    %v1179 = vxor.u32 %v1170, 2147483648
    %v1180 = vmul.f32 %v1179, 1.442695
    %v1181 = vpow.pop %v1180
    %v1182 = vadd.f32 %v1181, 1.0
    %v1183 = vrcp.pop %v1182
    %v1184 = vmul.f32 1.0, %v1183
    %v1185 = vtanh.pop %v1171
    %v1186 = vxor.u32 %v1172, 2147483648
    %v1187 = vmul.f32 %v1186, 1.442695
    %v1188 = vpow.pop %v1187
    %v1189 = vadd.f32 %v1188, 1.0
    %v1190 = vrcp.pop %v1189
    %v1191 = vmul.f32 1.0, %v1190
    %v1193 = vrot.slane %v1009, 7
    %v1195 = vmul.f32 %v1184, %v1193
    %v1196 = vmul.f32 %v1178, %v1185
    %v1197 = vadd.f32 %v1195, %v1196
    %v1198 = vtanh.pop %v1197
    %v1199 = vmul.f32 %v1191, %v1198
    %v1201 = vrot.slane %v1199, 3
    %1203 = vmatprep.subr.mxu0 %v466
    %1204 = vmatpush1.msra.mxu0 %v465
    %1205 = vmatprep.subr.mxu0 %v462
    %1206 = vmatpush1.msra.mxu0 %v461
    %1207 = vmatprep.subr.mxu0 %v458
    %1208 = vmatpush1.msra.mxu0 %v457
    %1209 = vmatprep.subr.mxu0 %v454
    %1210 = vmatpush1.msra.mxu0 %v453
    %1211 = vmatprep.subr.mxu0 %v450
    %1212 = vmatpush1.msra.mxu0 %v449
    %1213 = vmatprep.subr.mxu0 %v446
    %1214 = vmatpush1.msra.mxu0 %v445
    %1215 = vmatprep.subr.mxu0 %v442
    %1216 = vmatpush1.msra.mxu0 %v441
    %1217 = vmatprep.subr.mxu0 %v438
    %1218 = vmatpush1.msra.mxu0 %v437
    %1219 = vmatprep.subr.mxu0 %v434
    %1220 = vmatpush1.msra.mxu0 %v433
    %1221 = vmatprep.subr.mxu0 %v430
    %1222 = vmatpush1.msra.mxu0 %v429
    %1223 = vmatprep.subr.mxu0 %v426
    %1224 = vmatpush1.msra.mxu0 %v425
    %1225 = vmatprep.subr.mxu0 %v422
    %1226 = vmatpush1.msra.mxu0 %v421
    %1227 = vmatprep.subr.mxu0 %v418
    %1228 = vmatpush1.msra.mxu0 %v417
    %1229 = vmatprep.subr.mxu0 %v414
    %1230 = vmatpush1.msra.mxu0 %v413
    %1231 = vmatprep.subr.mxu0 %v410
    %1232 = vmatpush1.msra.mxu0 %v409
    %1233 = vmatprep.subr.mxu0 %v406
    %1234 = vmatpush1.msra.mxu0 %v405
    %1235 = vmatprep.subr.mxu0 0.0
    %1236 = vmatpush2.msra.mxu0 0.0
    %1237 = vmatprep.subr.mxu0 0.0
    %1238 = vmatpush2.msra.mxu0 0.0
    %1239 = vmatprep.subr.mxu0 0.0
    %1240 = vmatpush2.msra.mxu0 0.0
    %1241 = vmatprep.subr.mxu0 0.0
    %1242 = vmatpush2.msra.mxu0 0.0
    %1243 = vmatprep.subr.mxu0 0.0
    %1244 = vmatpush2.msra.mxu0 0.0
    %1245 = vmatprep.subr.mxu0 0.0
    %1246 = vmatpush2.msra.mxu0 0.0
    %1247 = vmatprep.subr.mxu0 0.0
    %1248 = vmatpush2.msra.mxu0 0.0
    %1249 = vmatprep.subr.mxu0 0.0
    %1250 = vmatpush2.msra.mxu0 0.0
    %1251 = vmatprep.subr.mxu0 0.0
    %1252 = vmatpush2.msra.mxu0 0.0
    %1253 = vmatprep.subr.mxu0 0.0
    %1254 = vmatpush2.msra.mxu0 0.0
    %1255 = vmatprep.subr.mxu0 0.0
    %1256 = vmatpush2.msra.mxu0 0.0
    %1257 = vmatprep.subr.mxu0 0.0
    %1258 = vmatpush2.msra.mxu0 0.0
    %1259 = vmatprep.subr.mxu0 0.0
    %1260 = vmatpush2.msra.mxu0 0.0
    %1261 = vmatprep.subr.mxu0 0.0
    %1262 = vmatpush2.msra.mxu0 0.0
    %1263 = vmatprep.subr.mxu0 0.0
    %1264 = vmatpush2.msra.mxu0 0.0
    %1265 = vmatprep.subr.mxu0 0.0
    %1266 = vmatpush2.msra.mxu0 0.0
    %1267 = vmatprep.mubr.f32.mxu0 0.0
    %1268 = vmatmul.mubr.f32.gmra.mxu0 %v1201
    %v1269 = vpop.f32.mrf.mxu0
    %v1270 = vadd.f32 0.0, %v1269
    %v1271 = vpop.f32.mrf.mxu0
    %v1272 = vadd.f32 0.0, %v1271
    %1273 = vdwg.mxu0
    %1274 = vmatprep.subr.mxu0 %v468
    %1275 = vmatpush1.msra.mxu0 %v467
    %1276 = vmatprep.subr.mxu0 %v464
    %1277 = vmatpush1.msra.mxu0 %v463
    %1278 = vmatprep.subr.mxu0 %v460
    %1279 = vmatpush1.msra.mxu0 %v459
    %1280 = vmatprep.subr.mxu0 %v456
    %1281 = vmatpush1.msra.mxu0 %v455
    %1282 = vmatprep.subr.mxu0 %v452
    %1283 = vmatpush1.msra.mxu0 %v451
    %1284 = vmatprep.subr.mxu0 %v448
    %1285 = vmatpush1.msra.mxu0 %v447
    %1286 = vmatprep.subr.mxu0 %v444
    %1287 = vmatpush1.msra.mxu0 %v443
    %1288 = vmatprep.subr.mxu0 %v440
    %1289 = vmatpush1.msra.mxu0 %v439
    %1290 = vmatprep.subr.mxu0 %v436
    %1291 = vmatpush1.msra.mxu0 %v435
    %1292 = vmatprep.subr.mxu0 %v432
    %1293 = vmatpush1.msra.mxu0 %v431
    %1294 = vmatprep.subr.mxu0 %v428
    %1295 = vmatpush1.msra.mxu0 %v427
    %1296 = vmatprep.subr.mxu0 %v424
    %1297 = vmatpush1.msra.mxu0 %v423
    %1298 = vmatprep.subr.mxu0 %v420
    %1299 = vmatpush1.msra.mxu0 %v419
    %1300 = vmatprep.subr.mxu0 %v416
    %1301 = vmatpush1.msra.mxu0 %v415
    %1302 = vmatprep.subr.mxu0 %v412
    %1303 = vmatpush1.msra.mxu0 %v411
    %1304 = vmatprep.subr.mxu0 %v408
    %1305 = vmatpush1.msra.mxu0 %v407
    %1306 = vmatprep.subr.mxu0 0.0
    %1307 = vmatpush2.msra.mxu0 0.0
    %1308 = vmatprep.subr.mxu0 0.0
    %1309 = vmatpush2.msra.mxu0 0.0
    %1310 = vmatprep.subr.mxu0 0.0
    %1311 = vmatpush2.msra.mxu0 0.0
    %1312 = vmatprep.subr.mxu0 0.0
    %1313 = vmatpush2.msra.mxu0 0.0
    %1314 = vmatprep.subr.mxu0 0.0
    %1315 = vmatpush2.msra.mxu0 0.0
    %1316 = vmatprep.subr.mxu0 0.0
    %1317 = vmatpush2.msra.mxu0 0.0
    %1318 = vmatprep.subr.mxu0 0.0
    %1319 = vmatpush2.msra.mxu0 0.0
    %1320 = vmatprep.subr.mxu0 0.0
    %1321 = vmatpush2.msra.mxu0 0.0
    %1322 = vmatprep.subr.mxu0 0.0
    %1323 = vmatpush2.msra.mxu0 0.0
    %1324 = vmatprep.subr.mxu0 0.0
    %1325 = vmatpush2.msra.mxu0 0.0
    %1326 = vmatprep.subr.mxu0 0.0
    %1327 = vmatpush2.msra.mxu0 0.0
    %1328 = vmatprep.subr.mxu0 0.0
    %1329 = vmatpush2.msra.mxu0 0.0
    %1330 = vmatprep.subr.mxu0 0.0
    %1331 = vmatpush2.msra.mxu0 0.0
    %1332 = vmatprep.subr.mxu0 0.0
    %1333 = vmatpush2.msra.mxu0 0.0
    %1334 = vmatprep.subr.mxu0 0.0
    %1335 = vmatpush2.msra.mxu0 0.0
    %1336 = vmatprep.subr.mxu0 0.0
    %1337 = vmatpush2.msra.mxu0 0.0
    %1338 = vmatprep.mubr.f32.mxu0 0.0
    %1339 = vmatmul.mubr.f32.gmra.mxu0 %v1201
    %v1340 = vpop.f32.mrf.mxu0
    %v1341 = vadd.f32 0.0, %v1340
    %v1342 = vpop.f32.mrf.mxu0
    %v1343 = vadd.f32 0.0, %v1342
    %1344 = vdwg.mxu0
    %v1349 = vrot.slane %v1270, 4
    %v1350 = vrot.slane %v1272, 4
    %v1351 = vrot.slane %v1341, 4
    %v1352 = vrot.slane %v1343, 4
    %v1357 = vadd.f32 %v330, %v1349
    %v1358 = vadd.f32 %v332, %v1350
    %v1359 = vadd.f32 %v401, %v1351
    %v1360 = vadd.f32 %v403, %v1352
    %v1361 = vxor.u32 %v1357, 2147483648
    %v1362 = vmul.f32 %v1361, 1.442695
    %v1363 = vpow.pop %v1362
    %v1364 = vadd.f32 %v1363, 1.0
    %v1365 = vrcp.pop %v1364
    %v1366 = vmul.f32 1.0, %v1365
    %v1367 = vxor.u32 %v1358, 2147483648
    %v1368 = vmul.f32 %v1367, 1.442695
    %v1369 = vpow.pop %v1368
    %v1370 = vadd.f32 %v1369, 1.0
    %v1371 = vrcp.pop %v1370
    %v1372 = vmul.f32 1.0, %v1371
    %v1373 = vtanh.pop %v1359
    %v1374 = vxor.u32 %v1360, 2147483648
    %v1375 = vmul.f32 %v1374, 1.442695
    %v1376 = vpow.pop %v1375
    %v1377 = vadd.f32 %v1376, 1.0
    %v1378 = vrcp.pop %v1377
    %v1379 = vmul.f32 1.0, %v1378
    %v1381 = vrot.slane %v1197, 7
    %v1383 = vmul.f32 %v1372, %v1381
    %v1384 = vmul.f32 %v1366, %v1373
    %v1385 = vadd.f32 %v1383, %v1384
    %v1386 = vtanh.pop %v1385
    %v1387 = vmul.f32 %v1379, %v1386
    %v1389 = vrot.slane %v1387, 4
    %1391 = vmatprep.subr.mxu0 %v466
    %1392 = vmatpush1.msra.mxu0 %v465
    %1393 = vmatprep.subr.mxu0 %v462
    %1394 = vmatpush1.msra.mxu0 %v461
    %1395 = vmatprep.subr.mxu0 %v458
    %1396 = vmatpush1.msra.mxu0 %v457
    %1397 = vmatprep.subr.mxu0 %v454
    %1398 = vmatpush1.msra.mxu0 %v453
    %1399 = vmatprep.subr.mxu0 %v450
    %1400 = vmatpush1.msra.mxu0 %v449
    %1401 = vmatprep.subr.mxu0 %v446
    %1402 = vmatpush1.msra.mxu0 %v445
    %1403 = vmatprep.subr.mxu0 %v442
    %1404 = vmatpush1.msra.mxu0 %v441
    %1405 = vmatprep.subr.mxu0 %v438
    %1406 = vmatpush1.msra.mxu0 %v437
    %1407 = vmatprep.subr.mxu0 %v434
    %1408 = vmatpush1.msra.mxu0 %v433
    %1409 = vmatprep.subr.mxu0 %v430
    %1410 = vmatpush1.msra.mxu0 %v429
    %1411 = vmatprep.subr.mxu0 %v426
    %1412 = vmatpush1.msra.mxu0 %v425
    %1413 = vmatprep.subr.mxu0 %v422
    %1414 = vmatpush1.msra.mxu0 %v421
    %1415 = vmatprep.subr.mxu0 %v418
    %1416 = vmatpush1.msra.mxu0 %v417
    %1417 = vmatprep.subr.mxu0 %v414
    %1418 = vmatpush1.msra.mxu0 %v413
    %1419 = vmatprep.subr.mxu0 %v410
    %1420 = vmatpush1.msra.mxu0 %v409
    %1421 = vmatprep.subr.mxu0 %v406
    %1422 = vmatpush1.msra.mxu0 %v405
    %1423 = vmatprep.subr.mxu0 0.0
    %1424 = vmatpush2.msra.mxu0 0.0
    %1425 = vmatprep.subr.mxu0 0.0
    %1426 = vmatpush2.msra.mxu0 0.0
    %1427 = vmatprep.subr.mxu0 0.0
    %1428 = vmatpush2.msra.mxu0 0.0
    %1429 = vmatprep.subr.mxu0 0.0
    %1430 = vmatpush2.msra.mxu0 0.0
    %1431 = vmatprep.subr.mxu0 0.0
    %1432 = vmatpush2.msra.mxu0 0.0
    %1433 = vmatprep.subr.mxu0 0.0
    %1434 = vmatpush2.msra.mxu0 0.0
    %1435 = vmatprep.subr.mxu0 0.0
    %1436 = vmatpush2.msra.mxu0 0.0
    %1437 = vmatprep.subr.mxu0 0.0
    %1438 = vmatpush2.msra.mxu0 0.0
    %1439 = vmatprep.subr.mxu0 0.0
    %1440 = vmatpush2.msra.mxu0 0.0
    %1441 = vmatprep.subr.mxu0 0.0
    %1442 = vmatpush2.msra.mxu0 0.0
    %1443 = vmatprep.subr.mxu0 0.0
    %1444 = vmatpush2.msra.mxu0 0.0
    %1445 = vmatprep.subr.mxu0 0.0
    %1446 = vmatpush2.msra.mxu0 0.0
    %1447 = vmatprep.subr.mxu0 0.0
    %1448 = vmatpush2.msra.mxu0 0.0
    %1449 = vmatprep.subr.mxu0 0.0
    %1450 = vmatpush2.msra.mxu0 0.0
    %1451 = vmatprep.subr.mxu0 0.0
    %1452 = vmatpush2.msra.mxu0 0.0
    %1453 = vmatprep.subr.mxu0 0.0
    %1454 = vmatpush2.msra.mxu0 0.0
    %1455 = vmatprep.mubr.f32.mxu0 0.0
    %1456 = vmatmul.mubr.f32.gmra.mxu0 %v1389
    %v1457 = vpop.f32.mrf.mxu0
    %v1458 = vadd.f32 0.0, %v1457
    %v1459 = vpop.f32.mrf.mxu0
    %v1460 = vadd.f32 0.0, %v1459
    %1461 = vdwg.mxu0
    %1462 = vmatprep.subr.mxu0 %v468
    %1463 = vmatpush1.msra.mxu0 %v467
    %1464 = vmatprep.subr.mxu0 %v464
    %1465 = vmatpush1.msra.mxu0 %v463
    %1466 = vmatprep.subr.mxu0 %v460
    %1467 = vmatpush1.msra.mxu0 %v459
    %1468 = vmatprep.subr.mxu0 %v456
    %1469 = vmatpush1.msra.mxu0 %v455
    %1470 = vmatprep.subr.mxu0 %v452
    %1471 = vmatpush1.msra.mxu0 %v451
    %1472 = vmatprep.subr.mxu0 %v448
    %1473 = vmatpush1.msra.mxu0 %v447
    %1474 = vmatprep.subr.mxu0 %v444
    %1475 = vmatpush1.msra.mxu0 %v443
    %1476 = vmatprep.subr.mxu0 %v440
    %1477 = vmatpush1.msra.mxu0 %v439
    %1478 = vmatprep.subr.mxu0 %v436
    %1479 = vmatpush1.msra.mxu0 %v435
    %1480 = vmatprep.subr.mxu0 %v432
    %1481 = vmatpush1.msra.mxu0 %v431
    %1482 = vmatprep.subr.mxu0 %v428
    %1483 = vmatpush1.msra.mxu0 %v427
    %1484 = vmatprep.subr.mxu0 %v424
    %1485 = vmatpush1.msra.mxu0 %v423
    %1486 = vmatprep.subr.mxu0 %v420
    %1487 = vmatpush1.msra.mxu0 %v419
    %1488 = vmatprep.subr.mxu0 %v416
    %1489 = vmatpush1.msra.mxu0 %v415
    %1490 = vmatprep.subr.mxu0 %v412
    %1491 = vmatpush1.msra.mxu0 %v411
    %1492 = vmatprep.subr.mxu0 %v408
    %1493 = vmatpush1.msra.mxu0 %v407
    %1494 = vmatprep.subr.mxu0 0.0
    %1495 = vmatpush2.msra.mxu0 0.0
    %1496 = vmatprep.subr.mxu0 0.0
    %1497 = vmatpush2.msra.mxu0 0.0
    %1498 = vmatprep.subr.mxu0 0.0
    %1499 = vmatpush2.msra.mxu0 0.0
    %1500 = vmatprep.subr.mxu0 0.0
    %1501 = vmatpush2.msra.mxu0 0.0
    %1502 = vmatprep.subr.mxu0 0.0
    %1503 = vmatpush2.msra.mxu0 0.0
    %1504 = vmatprep.subr.mxu0 0.0
    %1505 = vmatpush2.msra.mxu0 0.0
    %1506 = vmatprep.subr.mxu0 0.0
    %1507 = vmatpush2.msra.mxu0 0.0
    %1508 = vmatprep.subr.mxu0 0.0
    %1509 = vmatpush2.msra.mxu0 0.0
    %1510 = vmatprep.subr.mxu0 0.0
    %1511 = vmatpush2.msra.mxu0 0.0
    %1512 = vmatprep.subr.mxu0 0.0
    %1513 = vmatpush2.msra.mxu0 0.0
    %1514 = vmatprep.subr.mxu0 0.0
    %1515 = vmatpush2.msra.mxu0 0.0
    %1516 = vmatprep.subr.mxu0 0.0
    %1517 = vmatpush2.msra.mxu0 0.0
    %1518 = vmatprep.subr.mxu0 0.0
    %1519 = vmatpush2.msra.mxu0 0.0
    %1520 = vmatprep.subr.mxu0 0.0
    %1521 = vmatpush2.msra.mxu0 0.0
    %1522 = vmatprep.subr.mxu0 0.0
    %1523 = vmatpush2.msra.mxu0 0.0
    %1524 = vmatprep.subr.mxu0 0.0
    %1525 = vmatpush2.msra.mxu0 0.0
    %1526 = vmatprep.mubr.f32.mxu0 0.0
    %1527 = vmatmul.mubr.f32.gmra.mxu0 %v1389
    %v1528 = vpop.f32.mrf.mxu0
    %v1529 = vadd.f32 0.0, %v1528
    %v1530 = vpop.f32.mrf.mxu0
    %v1531 = vadd.f32 0.0, %v1530
    %1532 = vdwg.mxu0
    %v1537 = vrot.slane %v1458, 3
    %v1538 = vrot.slane %v1460, 3
    %v1539 = vrot.slane %v1529, 3
    %v1540 = vrot.slane %v1531, 3
    %v1545 = vadd.f32 %v330, %v1537
    %v1546 = vadd.f32 %v332, %v1538
    %v1547 = vadd.f32 %v401, %v1539
    %v1548 = vadd.f32 %v403, %v1540
    %v1549 = vxor.u32 %v1545, 2147483648
    %v1550 = vmul.f32 %v1549, 1.442695
    %v1551 = vpow.pop %v1550
    %v1552 = vadd.f32 %v1551, 1.0
    %v1553 = vrcp.pop %v1552
    %v1554 = vmul.f32 1.0, %v1553
    %v1555 = vxor.u32 %v1546, 2147483648
    %v1556 = vmul.f32 %v1555, 1.442695
    %v1557 = vpow.pop %v1556
    %v1558 = vadd.f32 %v1557, 1.0
    %v1559 = vrcp.pop %v1558
    %v1560 = vmul.f32 1.0, %v1559
    %v1561 = vtanh.pop %v1547
    %v1562 = vxor.u32 %v1548, 2147483648
    %v1563 = vmul.f32 %v1562, 1.442695
    %v1564 = vpow.pop %v1563
    %v1565 = vadd.f32 %v1564, 1.0
    %v1566 = vrcp.pop %v1565
    %v1567 = vmul.f32 1.0, %v1566
    %v1569 = vrot.slane %v1385, 7
    %v1571 = vmul.f32 %v1560, %v1569
    %v1572 = vmul.f32 %v1554, %v1561
    %v1573 = vadd.f32 %v1571, %v1572
    %v1574 = vtanh.pop %v1573
    %v1575 = vmul.f32 %v1567, %v1574
    %v1577 = vrot.slane %v1575, 5
    %1579 = vmatprep.subr.mxu0 %v466
    %1580 = vmatpush1.msra.mxu0 %v465
    %1581 = vmatprep.subr.mxu0 %v462
    %1582 = vmatpush1.msra.mxu0 %v461
    %1583 = vmatprep.subr.mxu0 %v458
    %1584 = vmatpush1.msra.mxu0 %v457
    %1585 = vmatprep.subr.mxu0 %v454
    %1586 = vmatpush1.msra.mxu0 %v453
    %1587 = vmatprep.subr.mxu0 %v450
    %1588 = vmatpush1.msra.mxu0 %v449
    %1589 = vmatprep.subr.mxu0 %v446
    %1590 = vmatpush1.msra.mxu0 %v445
    %1591 = vmatprep.subr.mxu0 %v442
    %1592 = vmatpush1.msra.mxu0 %v441
    %1593 = vmatprep.subr.mxu0 %v438
    %1594 = vmatpush1.msra.mxu0 %v437
    %1595 = vmatprep.subr.mxu0 %v434
    %1596 = vmatpush1.msra.mxu0 %v433
    %1597 = vmatprep.subr.mxu0 %v430
    %1598 = vmatpush1.msra.mxu0 %v429
    %1599 = vmatprep.subr.mxu0 %v426
    %1600 = vmatpush1.msra.mxu0 %v425
    %1601 = vmatprep.subr.mxu0 %v422
    %1602 = vmatpush1.msra.mxu0 %v421
    %1603 = vmatprep.subr.mxu0 %v418
    %1604 = vmatpush1.msra.mxu0 %v417
    %1605 = vmatprep.subr.mxu0 %v414
    %1606 = vmatpush1.msra.mxu0 %v413
    %1607 = vmatprep.subr.mxu0 %v410
    %1608 = vmatpush1.msra.mxu0 %v409
    %1609 = vmatprep.subr.mxu0 %v406
    %1610 = vmatpush1.msra.mxu0 %v405
    %1611 = vmatprep.subr.mxu0 0.0
    %1612 = vmatpush2.msra.mxu0 0.0
    %1613 = vmatprep.subr.mxu0 0.0
    %1614 = vmatpush2.msra.mxu0 0.0
    %1615 = vmatprep.subr.mxu0 0.0
    %1616 = vmatpush2.msra.mxu0 0.0
    %1617 = vmatprep.subr.mxu0 0.0
    %1618 = vmatpush2.msra.mxu0 0.0
    %1619 = vmatprep.subr.mxu0 0.0
    %1620 = vmatpush2.msra.mxu0 0.0
    %1621 = vmatprep.subr.mxu0 0.0
    %1622 = vmatpush2.msra.mxu0 0.0
    %1623 = vmatprep.subr.mxu0 0.0
    %1624 = vmatpush2.msra.mxu0 0.0
    %1625 = vmatprep.subr.mxu0 0.0
    %1626 = vmatpush2.msra.mxu0 0.0
    %1627 = vmatprep.subr.mxu0 0.0
    %1628 = vmatpush2.msra.mxu0 0.0
    %1629 = vmatprep.subr.mxu0 0.0
    %1630 = vmatpush2.msra.mxu0 0.0
    %1631 = vmatprep.subr.mxu0 0.0
    %1632 = vmatpush2.msra.mxu0 0.0
    %1633 = vmatprep.subr.mxu0 0.0
    %1634 = vmatpush2.msra.mxu0 0.0
    %1635 = vmatprep.subr.mxu0 0.0
    %1636 = vmatpush2.msra.mxu0 0.0
    %1637 = vmatprep.subr.mxu0 0.0
    %1638 = vmatpush2.msra.mxu0 0.0
    %1639 = vmatprep.subr.mxu0 0.0
    %1640 = vmatpush2.msra.mxu0 0.0
    %1641 = vmatprep.subr.mxu0 0.0
    %1642 = vmatpush2.msra.mxu0 0.0
    %1643 = vmatprep.mubr.f32.mxu0 0.0
    %1644 = vmatmul.mubr.f32.gmra.mxu0 %v1577
    %v1645 = vpop.f32.mrf.mxu0
    %v1646 = vadd.f32 0.0, %v1645
    %v1647 = vpop.f32.mrf.mxu0
    %v1648 = vadd.f32 0.0, %v1647
    %1649 = vdwg.mxu0
    %1650 = vmatprep.subr.mxu0 %v468
    %1651 = vmatpush1.msra.mxu0 %v467
    %1652 = vmatprep.subr.mxu0 %v464
    %1653 = vmatpush1.msra.mxu0 %v463
    %1654 = vmatprep.subr.mxu0 %v460
    %1655 = vmatpush1.msra.mxu0 %v459
    %1656 = vmatprep.subr.mxu0 %v456
    %1657 = vmatpush1.msra.mxu0 %v455
    %1658 = vmatprep.subr.mxu0 %v452
    %1659 = vmatpush1.msra.mxu0 %v451
    %1660 = vmatprep.subr.mxu0 %v448
    %1661 = vmatpush1.msra.mxu0 %v447
    %1662 = vmatprep.subr.mxu0 %v444
    %1663 = vmatpush1.msra.mxu0 %v443
    %1664 = vmatprep.subr.mxu0 %v440
    %1665 = vmatpush1.msra.mxu0 %v439
    %1666 = vmatprep.subr.mxu0 %v436
    %1667 = vmatpush1.msra.mxu0 %v435
    %1668 = vmatprep.subr.mxu0 %v432
    %1669 = vmatpush1.msra.mxu0 %v431
    %1670 = vmatprep.subr.mxu0 %v428
    %1671 = vmatpush1.msra.mxu0 %v427
    %1672 = vmatprep.subr.mxu0 %v424
    %1673 = vmatpush1.msra.mxu0 %v423
    %1674 = vmatprep.subr.mxu0 %v420
    %1675 = vmatpush1.msra.mxu0 %v419
    %1676 = vmatprep.subr.mxu0 %v416
    %1677 = vmatpush1.msra.mxu0 %v415
    %1678 = vmatprep.subr.mxu0 %v412
    %1679 = vmatpush1.msra.mxu0 %v411
    %1680 = vmatprep.subr.mxu0 %v408
    %1681 = vmatpush1.msra.mxu0 %v407
    %1682 = vmatprep.subr.mxu0 0.0
    %1683 = vmatpush2.msra.mxu0 0.0
    %1684 = vmatprep.subr.mxu0 0.0
    %1685 = vmatpush2.msra.mxu0 0.0
    %1686 = vmatprep.subr.mxu0 0.0
    %1687 = vmatpush2.msra.mxu0 0.0
    %1688 = vmatprep.subr.mxu0 0.0
    %1689 = vmatpush2.msra.mxu0 0.0
    %1690 = vmatprep.subr.mxu0 0.0
    %1691 = vmatpush2.msra.mxu0 0.0
    %1692 = vmatprep.subr.mxu0 0.0
    %1693 = vmatpush2.msra.mxu0 0.0
    %1694 = vmatprep.subr.mxu0 0.0
    %1695 = vmatpush2.msra.mxu0 0.0
    %1696 = vmatprep.subr.mxu0 0.0
    %1697 = vmatpush2.msra.mxu0 0.0
    %1698 = vmatprep.subr.mxu0 0.0
    %1699 = vmatpush2.msra.mxu0 0.0
    %1700 = vmatprep.subr.mxu0 0.0
    %1701 = vmatpush2.msra.mxu0 0.0
    %1702 = vmatprep.subr.mxu0 0.0
    %1703 = vmatpush2.msra.mxu0 0.0
    %1704 = vmatprep.subr.mxu0 0.0
    %1705 = vmatpush2.msra.mxu0 0.0
    %1706 = vmatprep.subr.mxu0 0.0
    %1707 = vmatpush2.msra.mxu0 0.0
    %1708 = vmatprep.subr.mxu0 0.0
    %1709 = vmatpush2.msra.mxu0 0.0
    %1710 = vmatprep.subr.mxu0 0.0
    %1711 = vmatpush2.msra.mxu0 0.0
    %1712 = vmatprep.subr.mxu0 0.0
    %1713 = vmatpush2.msra.mxu0 0.0
    %1714 = vmatprep.mubr.f32.mxu0 0.0
    %1715 = vmatmul.mubr.f32.gmra.mxu0 %v1577
    %v1716 = vpop.f32.mrf.mxu0
    %v1717 = vadd.f32 0.0, %v1716
    %v1718 = vpop.f32.mrf.mxu0
    %v1719 = vadd.f32 0.0, %v1718
    %1720 = vdwg.mxu0
    %v1725 = vrot.slane %v1646, 2
    %v1726 = vrot.slane %v1648, 2
    %v1727 = vrot.slane %v1717, 2
    %v1728 = vrot.slane %v1719, 2
    %v1733 = vadd.f32 %v330, %v1725
    %v1734 = vadd.f32 %v332, %v1726
    %v1735 = vadd.f32 %v401, %v1727
    %v1736 = vadd.f32 %v403, %v1728
    %v1737 = vxor.u32 %v1733, 2147483648
    %v1738 = vmul.f32 %v1737, 1.442695
    %v1739 = vpow.pop %v1738
    %v1740 = vadd.f32 %v1739, 1.0
    %v1741 = vrcp.pop %v1740
    %v1742 = vmul.f32 1.0, %v1741
    %v1743 = vxor.u32 %v1734, 2147483648
    %v1744 = vmul.f32 %v1743, 1.442695
    %v1745 = vpow.pop %v1744
    %v1746 = vadd.f32 %v1745, 1.0
    %v1747 = vrcp.pop %v1746
    %v1748 = vmul.f32 1.0, %v1747
    %v1749 = vtanh.pop %v1735
    %v1750 = vxor.u32 %v1736, 2147483648
    %v1751 = vmul.f32 %v1750, 1.442695
    %v1752 = vpow.pop %v1751
    %v1753 = vadd.f32 %v1752, 1.0
    %v1754 = vrcp.pop %v1753
    %v1755 = vmul.f32 1.0, %v1754
    %v1757 = vrot.slane %v1573, 7
    %v1759 = vmul.f32 %v1748, %v1757
    %v1760 = vmul.f32 %v1742, %v1749
    %v1761 = vadd.f32 %v1759, %v1760
    %v1762 = vtanh.pop %v1761
    %v1763 = vmul.f32 %v1755, %v1762
    %v1765 = vrot.slane %v1763, 6
    %1767 = vmatprep.subr.mxu0 %v466
    %1768 = vmatpush1.msra.mxu0 %v465
    %1769 = vmatprep.subr.mxu0 %v462
    %1770 = vmatpush1.msra.mxu0 %v461
    %1771 = vmatprep.subr.mxu0 %v458
    %1772 = vmatpush1.msra.mxu0 %v457
    %1773 = vmatprep.subr.mxu0 %v454
    %1774 = vmatpush1.msra.mxu0 %v453
    %1775 = vmatprep.subr.mxu0 %v450
    %1776 = vmatpush1.msra.mxu0 %v449
    %1777 = vmatprep.subr.mxu0 %v446
    %1778 = vmatpush1.msra.mxu0 %v445
    %1779 = vmatprep.subr.mxu0 %v442
    %1780 = vmatpush1.msra.mxu0 %v441
    %1781 = vmatprep.subr.mxu0 %v438
    %1782 = vmatpush1.msra.mxu0 %v437
    %1783 = vmatprep.subr.mxu0 %v434
    %1784 = vmatpush1.msra.mxu0 %v433
    %1785 = vmatprep.subr.mxu0 %v430
    %1786 = vmatpush1.msra.mxu0 %v429
    %1787 = vmatprep.subr.mxu0 %v426
    %1788 = vmatpush1.msra.mxu0 %v425
    %1789 = vmatprep.subr.mxu0 %v422
    %1790 = vmatpush1.msra.mxu0 %v421
    %1791 = vmatprep.subr.mxu0 %v418
    %1792 = vmatpush1.msra.mxu0 %v417
    %1793 = vmatprep.subr.mxu0 %v414
    %1794 = vmatpush1.msra.mxu0 %v413
    %1795 = vmatprep.subr.mxu0 %v410
    %1796 = vmatpush1.msra.mxu0 %v409
    %1797 = vmatprep.subr.mxu0 %v406
    %1798 = vmatpush1.msra.mxu0 %v405
    %1799 = vmatprep.subr.mxu0 0.0
    %1800 = vmatpush2.msra.mxu0 0.0
    %1801 = vmatprep.subr.mxu0 0.0
    %1802 = vmatpush2.msra.mxu0 0.0
    %1803 = vmatprep.subr.mxu0 0.0
    %1804 = vmatpush2.msra.mxu0 0.0
    %1805 = vmatprep.subr.mxu0 0.0
    %1806 = vmatpush2.msra.mxu0 0.0
    %1807 = vmatprep.subr.mxu0 0.0
    %1808 = vmatpush2.msra.mxu0 0.0
    %1809 = vmatprep.subr.mxu0 0.0
    %1810 = vmatpush2.msra.mxu0 0.0
    %1811 = vmatprep.subr.mxu0 0.0
    %1812 = vmatpush2.msra.mxu0 0.0
    %1813 = vmatprep.subr.mxu0 0.0
    %1814 = vmatpush2.msra.mxu0 0.0
    %1815 = vmatprep.subr.mxu0 0.0
    %1816 = vmatpush2.msra.mxu0 0.0
    %1817 = vmatprep.subr.mxu0 0.0
    %1818 = vmatpush2.msra.mxu0 0.0
    %1819 = vmatprep.subr.mxu0 0.0
    %1820 = vmatpush2.msra.mxu0 0.0
    %1821 = vmatprep.subr.mxu0 0.0
    %1822 = vmatpush2.msra.mxu0 0.0
    %1823 = vmatprep.subr.mxu0 0.0
    %1824 = vmatpush2.msra.mxu0 0.0
    %1825 = vmatprep.subr.mxu0 0.0
    %1826 = vmatpush2.msra.mxu0 0.0
    %1827 = vmatprep.subr.mxu0 0.0
    %1828 = vmatpush2.msra.mxu0 0.0
    %1829 = vmatprep.subr.mxu0 0.0
    %1830 = vmatpush2.msra.mxu0 0.0
    %1831 = vmatprep.mubr.f32.mxu0 0.0
    %1832 = vmatmul.mubr.f32.gmra.mxu0 %v1765
    %v1833 = vpop.f32.mrf.mxu0
    %v1834 = vadd.f32 0.0, %v1833
    %v1835 = vpop.f32.mrf.mxu0
    %v1836 = vadd.f32 0.0, %v1835
    %1837 = vdwg.mxu0
    %1838 = vmatprep.subr.mxu0 %v468
    %1839 = vmatpush1.msra.mxu0 %v467
    %1840 = vmatprep.subr.mxu0 %v464
    %1841 = vmatpush1.msra.mxu0 %v463
    %1842 = vmatprep.subr.mxu0 %v460
    %1843 = vmatpush1.msra.mxu0 %v459
    %1844 = vmatprep.subr.mxu0 %v456
    %1845 = vmatpush1.msra.mxu0 %v455
    %1846 = vmatprep.subr.mxu0 %v452
    %1847 = vmatpush1.msra.mxu0 %v451
    %1848 = vmatprep.subr.mxu0 %v448
    %1849 = vmatpush1.msra.mxu0 %v447
    %1850 = vmatprep.subr.mxu0 %v444
    %1851 = vmatpush1.msra.mxu0 %v443
    %1852 = vmatprep.subr.mxu0 %v440
    %1853 = vmatpush1.msra.mxu0 %v439
    %1854 = vmatprep.subr.mxu0 %v436
    %1855 = vmatpush1.msra.mxu0 %v435
    %1856 = vmatprep.subr.mxu0 %v432
    %1857 = vmatpush1.msra.mxu0 %v431
    %1858 = vmatprep.subr.mxu0 %v428
    %1859 = vmatpush1.msra.mxu0 %v427
    %1860 = vmatprep.subr.mxu0 %v424
    %1861 = vmatpush1.msra.mxu0 %v423
    %1862 = vmatprep.subr.mxu0 %v420
    %1863 = vmatpush1.msra.mxu0 %v419
    %1864 = vmatprep.subr.mxu0 %v416
    %1865 = vmatpush1.msra.mxu0 %v415
    %1866 = vmatprep.subr.mxu0 %v412
    %1867 = vmatpush1.msra.mxu0 %v411
    %1868 = vmatprep.subr.mxu0 %v408
    %1869 = vmatpush1.msra.mxu0 %v407
    %1870 = vmatprep.subr.mxu0 0.0
    %1871 = vmatpush2.msra.mxu0 0.0
    %1872 = vmatprep.subr.mxu0 0.0
    %1873 = vmatpush2.msra.mxu0 0.0
    %1874 = vmatprep.subr.mxu0 0.0
    %1875 = vmatpush2.msra.mxu0 0.0
    %1876 = vmatprep.subr.mxu0 0.0
    %1877 = vmatpush2.msra.mxu0 0.0
    %1878 = vmatprep.subr.mxu0 0.0
    %1879 = vmatpush2.msra.mxu0 0.0
    %1880 = vmatprep.subr.mxu0 0.0
    %1881 = vmatpush2.msra.mxu0 0.0
    %1882 = vmatprep.subr.mxu0 0.0
    %1883 = vmatpush2.msra.mxu0 0.0
    %1884 = vmatprep.subr.mxu0 0.0
    %1885 = vmatpush2.msra.mxu0 0.0
    %1886 = vmatprep.subr.mxu0 0.0
    %1887 = vmatpush2.msra.mxu0 0.0
    %1888 = vmatprep.subr.mxu0 0.0
    %1889 = vmatpush2.msra.mxu0 0.0
    %1890 = vmatprep.subr.mxu0 0.0
    %1891 = vmatpush2.msra.mxu0 0.0
    %1892 = vmatprep.subr.mxu0 0.0
    %1893 = vmatpush2.msra.mxu0 0.0
    %1894 = vmatprep.subr.mxu0 0.0
    %1895 = vmatpush2.msra.mxu0 0.0
    %1896 = vmatprep.subr.mxu0 0.0
    %1897 = vmatpush2.msra.mxu0 0.0
    %1898 = vmatprep.subr.mxu0 0.0
    %1899 = vmatpush2.msra.mxu0 0.0
    %1900 = vmatprep.subr.mxu0 0.0
    %1901 = vmatpush2.msra.mxu0 0.0
    %1902 = vmatprep.mubr.f32.mxu0 0.0
    %1903 = vmatmul.mubr.f32.gmra.mxu0 %v1765
    %v1904 = vpop.f32.mrf.mxu0
    %v1905 = vadd.f32 0.0, %v1904
    %v1906 = vpop.f32.mrf.mxu0
    %v1907 = vadd.f32 0.0, %v1906
    %1908 = vdwg.mxu0
    %v1913 = vrot.slane %v1834, 1
    %v1914 = vrot.slane %v1836, 1
    %v1915 = vrot.slane %v1905, 1
    %v1916 = vrot.slane %v1907, 1
    %v1921 = vadd.f32 %v330, %v1913
    %v1922 = vadd.f32 %v332, %v1914
    %v1923 = vadd.f32 %v401, %v1915
    %v1924 = vadd.f32 %v403, %v1916
    %v1925 = vxor.u32 %v1921, 2147483648
    %v1926 = vmul.f32 %v1925, 1.442695
    %v1927 = vpow.pop %v1926
    %v1928 = vadd.f32 %v1927, 1.0
    %v1929 = vrcp.pop %v1928
    %v1930 = vmul.f32 1.0, %v1929
    %v1931 = vxor.u32 %v1922, 2147483648
    %v1932 = vmul.f32 %v1931, 1.442695
    %v1933 = vpow.pop %v1932
    %v1934 = vadd.f32 %v1933, 1.0
    %v1935 = vrcp.pop %v1934
    %v1936 = vmul.f32 1.0, %v1935
    %v1937 = vtanh.pop %v1923
    %v1938 = vxor.u32 %v1924, 2147483648
    %v1939 = vmul.f32 %v1938, 1.442695
    %v1940 = vpow.pop %v1939
    %v1941 = vadd.f32 %v1940, 1.0
    %v1942 = vrcp.pop %v1941
    %v1943 = vmul.f32 1.0, %v1942
    %v1945 = vrot.slane %v1761, 7
    %v1947 = vmul.f32 %v1936, %v1945
    %v1948 = vmul.f32 %v1930, %v1937
    %v1949 = vadd.f32 %v1947, %v1948
    %v1950 = vtanh.pop %v1949
    %v1951 = vmul.f32 %v1943, %v1950
    %vm1952 = vcmask 1040384
    %v1953 = vsel %vm1952, %v638, %v823
    %vm1954 = vcmask 1041408
    %v1955 = vsel %vm1954, %v1953, %v1011
    %vm1956 = vcmask 1042432
    %v1957 = vsel %vm1956, %v1955, %v1199
    %vm1958 = vcmask 1043456
    %v1959 = vsel %vm1958, %v1957, %v1387
    %vm1960 = vcmask 1044480
    %v1961 = vsel %vm1960, %v1959, %v1575
    %vm1962 = vcmask 1045504
    %v1963 = vsel %vm1962, %v1961, %v1763
    %vm1964 = vcmask 1046528
    %v1965 = vsel %vm1964, %v1963, %v1951
    %v1966 = vld [vmem:[#allocation8] sm:$0xff]
    %v1967 = vld [vmem:[#allocation8 + $0x8] sm:$0xff]
    %v1968 = vld [vmem:[#allocation8 + $0x10] sm:$0xff]
    %v1969 = vld [vmem:[#allocation8 + $0x18] sm:$0xff]
    %v1970 = vld [vmem:[#allocation8 + $0x20] sm:$0xff]
    %v1971 = vld [vmem:[#allocation8 + $0x28] sm:$0xff]
    %v1972 = vld [vmem:[#allocation8 + $0x30] sm:$0xff]
    %v1973 = vld [vmem:[#allocation8 + $0x38] sm:$0xff]
    %v1974 = vld [vmem:[#allocation8 + $0x40] sm:$0xff]
    %v1975 = vld [vmem:[#allocation8 + $0x48] sm:$0xff]
    %v1976 = vld [vmem:[#allocation8 + $0x50] sm:$0xff]
    %v1977 = vld [vmem:[#allocation8 + $0x58] sm:$0xff]
    %v1978 = vld [vmem:[#allocation8 + $0x60] sm:$0xff]
    %v1979 = vld [vmem:[#allocation8 + $0x68] sm:$0xff]
    %v1980 = vld [vmem:[#allocation8 + $0x70] sm:$0xff]
    %v1981 = vld [vmem:[#allocation8 + $0x78] sm:$0xff]
    %v1982 = vld [vmem:[%s6] sm:$0x1]
    %v1984 = vlaneseq
    %v1985 = vshrl.u32 %v1984, 7
    %v1986 = vsub.s32 0, %v1985
    %v1987 = vrot.slane %v1982, %v1986
    %1989 = vmatprep.subr.mxu0 0.0
    %1990 = vmatpush1.msra.mxu0 %v1981
    %1991 = vmatprep.subr.mxu0 0.0
    %1992 = vmatpush1.msra.mxu0 %v1980
    %1993 = vmatprep.subr.mxu0 0.0
    %1994 = vmatpush1.msra.mxu0 %v1979
    %1995 = vmatprep.subr.mxu0 0.0
    %1996 = vmatpush1.msra.mxu0 %v1978
    %1997 = vmatprep.subr.mxu0 0.0
    %1998 = vmatpush1.msra.mxu0 %v1977
    %1999 = vmatprep.subr.mxu0 0.0
    %2000 = vmatpush1.msra.mxu0 %v1976
    %2001 = vmatprep.subr.mxu0 0.0
    %2002 = vmatpush1.msra.mxu0 %v1975
    %2003 = vmatprep.subr.mxu0 0.0
    %2004 = vmatpush1.msra.mxu0 %v1974
    %2005 = vmatprep.subr.mxu0 0.0
    %2006 = vmatpush1.msra.mxu0 %v1973
    %2007 = vmatprep.subr.mxu0 0.0
    %2008 = vmatpush1.msra.mxu0 %v1972
    %2009 = vmatprep.subr.mxu0 0.0
    %2010 = vmatpush1.msra.mxu0 %v1971
    %2011 = vmatprep.subr.mxu0 0.0
    %2012 = vmatpush1.msra.mxu0 %v1970
    %2013 = vmatprep.subr.mxu0 0.0
    %2014 = vmatpush1.msra.mxu0 %v1969
    %2015 = vmatprep.subr.mxu0 0.0
    %2016 = vmatpush1.msra.mxu0 %v1968
    %2017 = vmatprep.subr.mxu0 0.0
    %2018 = vmatpush1.msra.mxu0 %v1967
    %2019 = vmatprep.subr.mxu0 0.0
    %2020 = vmatpush1.msra.mxu0 %v1966
    %2021 = vmatprep.subr.mxu0 0.0
    %2022 = vmatpush2.msra.mxu0 0.0
    %2023 = vmatprep.subr.mxu0 0.0
    %2024 = vmatpush2.msra.mxu0 0.0
    %2025 = vmatprep.subr.mxu0 0.0
    %2026 = vmatpush2.msra.mxu0 0.0
    %2027 = vmatprep.subr.mxu0 0.0
    %2028 = vmatpush2.msra.mxu0 0.0
    %2029 = vmatprep.subr.mxu0 0.0
    %2030 = vmatpush2.msra.mxu0 0.0
    %2031 = vmatprep.subr.mxu0 0.0
    %2032 = vmatpush2.msra.mxu0 0.0
    %2033 = vmatprep.subr.mxu0 0.0
    %2034 = vmatpush2.msra.mxu0 0.0
    %2035 = vmatprep.subr.mxu0 0.0
    %2036 = vmatpush2.msra.mxu0 0.0
    %2037 = vmatprep.subr.mxu0 0.0
    %2038 = vmatpush2.msra.mxu0 0.0
    %2039 = vmatprep.subr.mxu0 0.0
    %2040 = vmatpush2.msra.mxu0 0.0
    %2041 = vmatprep.subr.mxu0 0.0
    %2042 = vmatpush2.msra.mxu0 0.0
    %2043 = vmatprep.subr.mxu0 0.0
    %2044 = vmatpush2.msra.mxu0 0.0
    %2045 = vmatprep.subr.mxu0 0.0
    %2046 = vmatpush2.msra.mxu0 0.0
    %2047 = vmatprep.subr.mxu0 0.0
    %2048 = vmatpush2.msra.mxu0 0.0
    %2049 = vmatprep.subr.mxu0 0.0
    %2050 = vmatpush2.msra.mxu0 0.0
    %2051 = vmatprep.subr.mxu0 0.0
    %2052 = vmatpush2.msra.mxu0 0.0
    %2053 = vmatprep.mubr.f32.mxu0 0.0
    %2054 = vmatmul.mubr.f32.gmra.mxu0 %v1965
    %v2055 = vpop.f32.mrf.mxu0
    %v2056 = vadd.f32 %v1987, %v2055
    %v2057 = vpop.f32.mrf.mxu0
    %2058 = vdwg.mxu0
    %vm2059 = vcmp.lt.s32.totalorder %v84, 8
    %v2060 = vsel %vm2059, %v2056, -1e+30
    %2061 = vmax.xlane.f32.xlu0 %v2060
    %v2062 = vpop.xlane.xlu0 %2061
    %v2063 = vsub.f32 %v2056, %v2062
    %v2064 = vmul.f32 %v2063, 1.442695
    %v2065 = vpow.pop %v2064
    %v2066 = vsel %vm2059, %v2065, 0.0
    %2067 = vadd.xlane.f32.xlu0 %v2066
    %v2068 = vpop.xlane.xlu0 %2067
    %v2069 = vlog2.pop %v2068
    %v2070 = vmul.f32 %v2069, 0.6931472
    %v2071 = vadd.f32 %v2062, %v2070
    %v2072 = vsub.f32 %v2056, %v2071
    %2073 = vst [vmem:[#allocation10] sm:$0xff] %v2072
    // Predicated region
    $region46: #{tagger_forward.1} parent=1 // pred_check
      _
    $region47: #{tagger_forward.1} parent=1 // pred_check_branch
      %2075 = sbr.rel (0) target = $region49
    $region48: #{tagger_forward.1} parent=1 // pred_region
      %s2077 = ssub.s32 128, 128
      %2078 = vsyncadd [#allocation4], %s2077
      %s2080 = sshll.u32 [#allocation10], 4
      %s2081 = int_to_ptr.vmem [resolvable:$true] %s2080
      %2083 = dma.vmem_to_hbm [thread:$0]  %s2081, 128, %s7, [#allocation4]
    $region49: #{tagger_forward.1} parent=1 // pred_fallthru
      _
    // Predicated region
    $region50: #{tagger_forward.1} parent=1 // pred_check
      _
    $region51: #{tagger_forward.1} parent=1 // pred_check_branch
      %2085 = sbr.rel (0) target = $region53
    $region52: #{tagger_forward.1} parent=1 // pred_region
      %2086 = dma.done [#allocation4], 128
    $region53: #{tagger_forward.1} parent=1 // pred_fallthru
      _
    %2087 = vsyncpa [#allocation3], 1
    %2088 = vsyncpa [#allocation6], 1
    %2089 = vsyncpa [#allocation9], 1
    %2090 = vsyncpa [#allocation4], 1

</llo_original>
